<compile_context>
chip_gen: v7x
topology: tpu7x:2x2x1
jax: 0.10.0
libtpu: 0.0.40
codegen_flags: <defaults>
</compile_context>

<pallas_src>
import functools

import jax
import jax.numpy as jnp
from jax.experimental import pallas as pl
from jax.experimental.pallas import tpu as pltpu


# ----------------------------------------------------------------------------
# Kernel
# ----------------------------------------------------------------------------
def seq2seq_kernel(
    xp_ref,                     # (B*(Te+Td), Din+Dd+2) packed enc/dec inputs
    wconv_ref,                  # (Din+Dd+2, 2C+2)  block conv weights + biases
    wih_ref,                    # (2C+2, 4H)        block W_ih^T + folded LSTM biases
    whhTe_ref, whhTd_ref,       # (H, 4H) each      recurrent weights (pre-transposed)
    wfcT_ref, bfc_ref,          # (H, Dout), (1, Dout)  final Linear
    out_ref,                    # (B, Td*Dout)      lane-dense output slab
    dec_h_ref,                  # scratch VMEM (B, Td, H)
    *, B, Te, Td,
):
    H = whhTe_ref.shape[0]
    Dout = wfcT_ref.shape[1]

    # ---- one MXU push for both 1x1 convs (+biases), one for both W_ih (+biases)
    feat = jnp.dot(xp_ref[...], wconv_ref[...],
                   preferred_element_type=jnp.float32)          # (M, 2C+2)
    pre = jnp.dot(feat, wih_ref[...],
                  preferred_element_type=jnp.float32)           # (M, 4H)
    enc_pre = pre[:B * Te].reshape(B, Te, 4 * H)
    dec_pre = pre[B * Te:].reshape(B, Td, 4 * H)

    whhT_e = whhTe_ref[...]
    whhT_d = whhTd_ref[...]

    # PyTorch gate order [i, f, g, o]; g lanes (2H:3H) get tanh, rest sigmoid.
    # Single lane mask hoisted out of the time loops.
    lane = jax.lax.broadcasted_iota(jnp.int32, (B, 4 * H), 1)
    g_mask = jnp.logical_and(lane >= 2 * H, lane < 3 * H)

    def cell(pre_t, h, c, whhT):
        gates = pre_t + jnp.dot(h, whhT, preferred_element_type=jnp.float32)
        # One masked nonlinearity pass over the whole 4H-lane vreg (EUP),
        # slices below only feed VPU multiplies.
        act = jnp.where(g_mask, jnp.tanh(gates), jax.nn.sigmoid(gates))
        i = act[:, 0 * H:1 * H]
        f = act[:, 1 * H:2 * H]
        g = act[:, 2 * H:3 * H]
        o = act[:, 3 * H:4 * H]
        c_new = f * c + i * g
        h_new = o * jnp.tanh(c_new)
        return h_new, c_new

    # ---- encoder LSTM (h0 = c0 = 0), keep only final (h, c) -----------------
    h = jnp.zeros((B, H), jnp.float32)
    c = jnp.zeros((B, H), jnp.float32)
    for t in range(Te):                         # small static trip count
        h, c = cell(enc_pre[:, t, :], h, c, whhT_e)

    # ---- decoder LSTM seeded with encoder state; write h in place -----------
    for t in range(Td):
        h, c = cell(dec_pre[:, t, :], h, c, whhT_d)
        dec_h_ref[:, t, :] = h

    # ---- final Linear over all decoder steps, lane-dense store --------------
    dec_h = dec_h_ref[...].reshape(B * Td, H)
    out = jnp.dot(dec_h, wfcT_ref[...],
                  preferred_element_type=jnp.float32) + bfc_ref[...]
    out_ref[...] = out.reshape(B, Td * Dout)


# ----------------------------------------------------------------------------
# Wrapper: packs inputs/weights into block matrices, calls the kernel.
# ----------------------------------------------------------------------------
def seq2seq_forward(enc_x, dec_x, params):
    B, Te, Din = enc_x.shape
    _, Td, Dd = dec_x.shape                     # Dd == Din - 1
    C = params["wceT"].shape[1]
    H = params["whhT_e"].shape[0]
    Dout = params["wfcT"].shape[1]

    ne, nd = B * Te, B * Td
    enc_flat = enc_x.reshape(ne, Din).astype(jnp.float32)
    dec_flat = dec_x.reshape(nd, Dd).astype(jnp.float32)

    # Packed inputs: enc rows = [enc | 0 | 1 0], dec rows = [0 | dec | 0 1].
    # The trailing indicator columns route the per-branch (conv + LSTM) biases
    # through the two block matmuls inside the kernel.
    x_packed = jnp.concatenate([
        jnp.concatenate([enc_flat,
                         jnp.zeros((ne, Dd), jnp.float32),
                         jnp.ones((ne, 1), jnp.float32),
                         jnp.zeros((ne, 1), jnp.float32)], axis=1),
        jnp.concatenate([jnp.zeros((nd, Din), jnp.float32),
                         dec_flat,
                         jnp.zeros((nd, 1), jnp.float32),
                         jnp.ones((nd, 1), jnp.float32)], axis=1),
    ], axis=0)                                  # (ne+nd, Din+Dd+2)

    # Block conv weight: [[wceT, 0, 0, 0], [0, wcdT, 0, 0],
    #                     [bce,  0, 1, 0], [0,  bcd, 0, 1]]
    K1 = Din + Dd + 2
    w_conv = jnp.zeros((K1, 2 * C + 2), jnp.float32)
    w_conv = w_conv.at[:Din, :C].set(params["wceT"])
    w_conv = w_conv.at[Din:Din + Dd, C:2 * C].set(params["wcdT"])
    w_conv = w_conv.at[Din + Dd, :C].set(params["bce"][0])
    w_conv = w_conv.at[Din + Dd, 2 * C].set(1.0)
    w_conv = w_conv.at[Din + Dd + 1, C:2 * C].set(params["bcd"][0])
    w_conv = w_conv.at[Din + Dd + 1, 2 * C + 1].set(1.0)

    # Block W_ih^T with folded (b_ih + b_hh) biases as the last two rows.
    w_ih = jnp.concatenate([params["wihT_e"], params["wihT_d"],
                            params["b_e"], params["b_d"]], axis=0)   # (2C+2, 4H)

    kernel = functools.partial(seq2seq_kernel, B=B, Te=Te, Td=Td)
    vmem = pl.BlockSpec(memory_space=pltpu.MemorySpace.VMEM)

    out2d = pl.pallas_call(
        kernel,
        out_shape=jax.ShapeDtypeStruct((B, Td * Dout), jnp.float32),
        in_specs=[vmem] * 7,
        out_specs=vmem,
        scratch_shapes=[pltpu.VMEM((B, Td, H), jnp.float32)],
    )(x_packed, w_conv, w_ih,
      params["whhT_e"], params["whhT_d"], params["wfcT"], params["bfc"])

    return out2d.reshape(B, Td, Dout)


seq2seq_forward_jit = jax.jit(seq2seq_forward)


# ----------------------------------------------------------------------------
# Pure-JAX reference (mirrors the PyTorch module math, for correctness check)
# ----------------------------------------------------------------------------
def seq2seq_reference(enc_x, dec_x, params):
    H = params["whhT_e"].shape[0]

    def cell(pre_t, h, c, whhT):
        gates = pre_t + h @ whhT
        i = jax.nn.sigmoid(gates[:, 0 * H:1 * H])
        f = jax.nn.sigmoid(gates[:, 1 * H:2 * H])
        g = jnp.tanh(gates[:, 2 * H:3 * H])
        o = jax.nn.sigmoid(gates[:, 3 * H:4 * H])
        c = f * c + i * g
        return o * jnp.tanh(c), c

    enc_feat = enc_x @ params["wceT"] + params["bce"]
    dec_feat = dec_x @ params["wcdT"] + params["bcd"]
    enc_pre = enc_feat @ params["wihT_e"] + params["b_e"]
    dec_pre = dec_feat @ params["wihT_d"] + params["b_d"]

    B = enc_x.shape[0]
    h = jnp.zeros((B, H), jnp.float32)
    c = jnp.zeros((B, H), jnp.float32)
    for t in range(enc_x.shape[1]):
        h, c = cell(enc_pre[:, t, :], h, c, params["whhT_e"])
    hs = []
    for t in range(dec_x.shape[1]):
        h, c = cell(dec_pre[:, t, :], h, c, params["whhT_d"])
        hs.append(h)
    dec_h = jnp.stack(hs, axis=1)
    return dec_h @ params["wfcT"] + params["bfc"]


# ----------------------------------------------------------------------------
# Deterministic parameter init + demo
# ----------------------------------------------------------------------------
def make_params(key, input_dim, hidden_dim, output_dim, cnn_channels):
    ks = jax.random.split(key, 16)
    s = 0.1

    def rnd(k, shape):
        return jax.random.normal(k, shape, jnp.float32) * s

    H, C = hidden_dim, cnn_channels
    # Conv1d(k=1) weights stored pre-transposed as (Cin, Cout); PyTorch is
    # (Cout, Cin, 1). LSTM weights pre-transposed: W_ih^T (C, 4H), W_hh^T (H, 4H).
    # b_* = b_ih + b_hh folded into one (1, 4H) bias (mathematically identical).
    return {
        "wceT":   rnd(ks[0], (input_dim, C)),
        "bce":    rnd(ks[1], (1, C)),
        "wcdT":   rnd(ks[2], (input_dim - 1, C)),
        "bcd":    rnd(ks[3], (1, C)),
        "wihT_e": rnd(ks[4], (C, 4 * H)),
        "whhT_e": rnd(ks[5], (H, 4 * H)),
        "b_e":    rnd(ks[6], (1, 4 * H)) + rnd(ks[7], (1, 4 * H)),
        "wihT_d": rnd(ks[8], (C, 4 * H)),
        "whhT_d": rnd(ks[9], (H, 4 * H)),
        "b_d":    rnd(ks[10], (1, 4 * H)) + rnd(ks[11], (1, 4 * H)),
        "wfcT":   rnd(ks[12], (H, output_dim)),
        "bfc":    rnd(ks[13], (1, output_dim)),
    }


if __name__ == "__main__":
    B, T_enc, T_dec = 2, 8, 8
    INPUT_SIZE, HIDDEN_SIZE, OUTPUT_DIM, CNN_CH = 4, 32, 1, 16

    key = jax.random.PRNGKey(0)
    k_enc, k_dec, k_par = jax.random.split(key, 3)
    enc_x = jax.random.normal(k_enc, (B, T_enc, INPUT_SIZE), jnp.float32)
    dec_x = jax.random.normal(k_dec, (B, T_dec, INPUT_SIZE - 1), jnp.float32)
    params = make_params(k_par, INPUT_SIZE, HIDDEN_SIZE, OUTPUT_DIM, CNN_CH)

    out = seq2seq_forward_jit(enc_x, dec_x, params)
    out = jax.block_until_ready(out)

    ref = seq2seq_reference(enc_x, dec_x, params)
    assert out.shape == (B, T_dec, OUTPUT_DIM)
    assert jnp.allclose(out, ref, atol=1e-5, rtol=1e-5), "mismatch vs reference"

    print("KERNEL_OK")
</pallas_src>

<mosaic_0001>
module attributes {stable_mosaic.version = 11 : i64} {
  func.func @seq2seq_kernel(%arg0: memref<32x9xf32, #tpu.memory_space<vmem>>, %arg1: memref<9x34xf32, #tpu.memory_space<vmem>>, %arg2: memref<34x128xf32, #tpu.memory_space<vmem>>, %arg3: memref<32x128xf32, #tpu.memory_space<vmem>>, %arg4: memref<32x128xf32, #tpu.memory_space<vmem>>, %arg5: memref<32x1xf32, #tpu.memory_space<vmem>>, %arg6: memref<1x1xf32, #tpu.memory_space<vmem>>, %arg7: memref<2x8xf32, #tpu.memory_space<vmem>>, %arg8: memref<2x8x32xf32, #tpu.memory_space<vmem>>) attributes {dimension_semantics = [], scalar_prefetch = 0 : i64, scratch_operands = 1 : i64, tpu.core_type = #tpu.core_type<tc>} {
    %c0 = arith.constant 0 : index
    %c0_0 = arith.constant 0 : index
    %0 = vector.load %arg0[%c0, %c0_0] : memref<32x9xf32, #tpu.memory_space<vmem>>, vector<32x9xf32>
    %c0_1 = arith.constant 0 : index
    %c0_2 = arith.constant 0 : index
    %1 = vector.load %arg1[%c0_1, %c0_2] : memref<9x34xf32, #tpu.memory_space<vmem>>, vector<9x34xf32>
    %cst = arith.constant dense<0.000000e+00> : vector<32x34xf32>
    %2 = tpu.matmul %0, %1, %cst {dimension_numbers = #tpu.dot_dimension_numbers<[1], [0], [0], [1], [0, 0, 1, 1], [], []>} : vector<32x9xf32>, vector<9x34xf32>, vector<32x34xf32> -> vector<32x34xf32>
    %c0_3 = arith.constant 0 : index
    %c0_4 = arith.constant 0 : index
    %3 = vector.load %arg2[%c0_3, %c0_4] : memref<34x128xf32, #tpu.memory_space<vmem>>, vector<34x128xf32>
    %cst_5 = arith.constant dense<0.000000e+00> : vector<32x128xf32>
    %4 = tpu.matmul %2, %3, %cst_5 {dimension_numbers = #tpu.dot_dimension_numbers<[1], [0], [0], [1], [0, 0, 1, 1], [], []>} : vector<32x34xf32>, vector<34x128xf32>, vector<32x128xf32> -> vector<32x128xf32>
    %5 = vector.extract_strided_slice %4 {offsets = [0, 0], sizes = [16, 128], strides = [1, 1]} : vector<32x128xf32> to vector<16x128xf32>
    %6 = vector.shape_cast %5 : vector<16x128xf32> to vector<2x8x128xf32>
    %7 = vector.extract_strided_slice %4 {offsets = [16, 0], sizes = [16, 128], strides = [1, 1]} : vector<32x128xf32> to vector<16x128xf32>
    %8 = vector.shape_cast %7 : vector<16x128xf32> to vector<2x8x128xf32>
    %c0_6 = arith.constant 0 : index
    %c0_7 = arith.constant 0 : index
    %9 = vector.load %arg3[%c0_6, %c0_7] : memref<32x128xf32, #tpu.memory_space<vmem>>, vector<32x128xf32>
    %c0_8 = arith.constant 0 : index
    %c0_9 = arith.constant 0 : index
    %10 = vector.load %arg4[%c0_8, %c0_9] : memref<32x128xf32, #tpu.memory_space<vmem>>, vector<32x128xf32>
    %11 = tpu.iota {dimensions = array<i32: 1>} : vector<2x128xi32>
    %c64_i32 = arith.constant 64 : i32
    %12 = vector.broadcast %c64_i32 : i32 to vector<2x128xi32>
    %13 = arith.cmpi sge, %11, %12 : vector<2x128xi32>
    %c96_i32 = arith.constant 96 : i32
    %14 = vector.broadcast %c96_i32 : i32 to vector<2x128xi32>
    %15 = arith.cmpi slt, %11, %14 : vector<2x128xi32>
    %16 = arith.andi %13, %15 : vector<2x128xi1>
    %cst_10 = arith.constant 0.000000e+00 : f32
    %17 = vector.broadcast %cst_10 : f32 to vector<2x32xf32>
    %cst_11 = arith.constant 0.000000e+00 : f32
    %18 = vector.broadcast %cst_11 : f32 to vector<2x32xf32>
    %19 = vector.extract_strided_slice %6 {offsets = [0, 0, 0], sizes = [2, 1, 128], strides = [1, 1, 1]} : vector<2x8x128xf32> to vector<2x1x128xf32>
    %20 = vector.shape_cast %19 : vector<2x1x128xf32> to vector<2x128xf32>
    %cst_12 = arith.constant dense<0.000000e+00> : vector<2x128xf32>
    %21 = tpu.matmul %17, %9, %cst_12 {dimension_numbers = #tpu.dot_dimension_numbers<[1], [0], [0], [1], [0, 0, 1, 1], [], []>} : vector<2x32xf32>, vector<32x128xf32>, vector<2x128xf32> -> vector<2x128xf32>
    %22 = arith.addf %20, %21 : vector<2x128xf32>
    %23 = math.tanh %22 : vector<2x128xf32>
    %24 = arith.negf %22 : vector<2x128xf32>
    %25 = math.exp %24 : vector<2x128xf32>
    %cst_13 = arith.constant 1.000000e+00 : f32
    %26 = vector.broadcast %cst_13 : f32 to vector<2x128xf32>
    %27 = arith.addf %26, %25 : vector<2x128xf32>
    %28 = arith.divf %26, %27 : vector<2x128xf32>
    %29 = arith.select %16, %23, %28 : vector<2x128xi1>, vector<2x128xf32>
    %30 = vector.extract_strided_slice %29 {offsets = [0, 0], sizes = [2, 32], strides = [1, 1]} : vector<2x128xf32> to vector<2x32xf32>
    %31 = vector.extract_strided_slice %29 {offsets = [0, 32], sizes = [2, 32], strides = [1, 1]} : vector<2x128xf32> to vector<2x32xf32>
    %32 = vector.extract_strided_slice %29 {offsets = [0, 64], sizes = [2, 32], strides = [1, 1]} : vector<2x128xf32> to vector<2x32xf32>
    %33 = vector.extract_strided_slice %29 {offsets = [0, 96], sizes = [2, 32], strides = [1, 1]} : vector<2x128xf32> to vector<2x32xf32>
    %34 = arith.mulf %31, %18 : vector<2x32xf32>
    %35 = arith.mulf %30, %32 : vector<2x32xf32>
    %36 = arith.addf %34, %35 : vector<2x32xf32>
    %37 = math.tanh %36 : vector<2x32xf32>
    %38 = arith.mulf %33, %37 : vector<2x32xf32>
    %39 = vector.extract_strided_slice %6 {offsets = [0, 1, 0], sizes = [2, 1, 128], strides = [1, 1, 1]} : vector<2x8x128xf32> to vector<2x1x128xf32>
    %40 = vector.shape_cast %39 : vector<2x1x128xf32> to vector<2x128xf32>
    %cst_14 = arith.constant dense<0.000000e+00> : vector<2x128xf32>
    %41 = tpu.matmul %38, %9, %cst_14 {dimension_numbers = #tpu.dot_dimension_numbers<[1], [0], [0], [1], [0, 0, 1, 1], [], []>} : vector<2x32xf32>, vector<32x128xf32>, vector<2x128xf32> -> vector<2x128xf32>
    %42 = arith.addf %40, %41 : vector<2x128xf32>
    %43 = math.tanh %42 : vector<2x128xf32>
    %44 = arith.negf %42 : vector<2x128xf32>
    %45 = math.exp %44 : vector<2x128xf32>
    %cst_15 = arith.constant 1.000000e+00 : f32
    %46 = vector.broadcast %cst_15 : f32 to vector<2x128xf32>
    %47 = arith.addf %46, %45 : vector<2x128xf32>
    %48 = arith.divf %46, %47 : vector<2x128xf32>
    %49 = arith.select %16, %43, %48 : vector<2x128xi1>, vector<2x128xf32>
    %50 = vector.extract_strided_slice %49 {offsets = [0, 0], sizes = [2, 32], strides = [1, 1]} : vector<2x128xf32> to vector<2x32xf32>
    %51 = vector.extract_strided_slice %49 {offsets = [0, 32], sizes = [2, 32], strides = [1, 1]} : vector<2x128xf32> to vector<2x32xf32>
    %52 = vector.extract_strided_slice %49 {offsets = [0, 64], sizes = [2, 32], strides = [1, 1]} : vector<2x128xf32> to vector<2x32xf32>
    %53 = vector.extract_strided_slice %49 {offsets = [0, 96], sizes = [2, 32], strides = [1, 1]} : vector<2x128xf32> to vector<2x32xf32>
    %54 = arith.mulf %51, %36 : vector<2x32xf32>
    %55 = arith.mulf %50, %52 : vector<2x32xf32>
    %56 = arith.addf %54, %55 : vector<2x32xf32>
    %57 = math.tanh %56 : vector<2x32xf32>
    %58 = arith.mulf %53, %57 : vector<2x32xf32>
    %59 = vector.extract_strided_slice %6 {offsets = [0, 2, 0], sizes = [2, 1, 128], strides = [1, 1, 1]} : vector<2x8x128xf32> to vector<2x1x128xf32>
    %60 = vector.shape_cast %59 : vector<2x1x128xf32> to vector<2x128xf32>
    %cst_16 = arith.constant dense<0.000000e+00> : vector<2x128xf32>
    %61 = tpu.matmul %58, %9, %cst_16 {dimension_numbers = #tpu.dot_dimension_numbers<[1], [0], [0], [1], [0, 0, 1, 1], [], []>} : vector<2x32xf32>, vector<32x128xf32>, vector<2x128xf32> -> vector<2x128xf32>
    %62 = arith.addf %60, %61 : vector<2x128xf32>
    %63 = math.tanh %62 : vector<2x128xf32>
    %64 = arith.negf %62 : vector<2x128xf32>
    %65 = math.exp %64 : vector<2x128xf32>
    %cst_17 = arith.constant 1.000000e+00 : f32
    %66 = vector.broadcast %cst_17 : f32 to vector<2x128xf32>
    %67 = arith.addf %66, %65 : vector<2x128xf32>
    %68 = arith.divf %66, %67 : vector<2x128xf32>
    %69 = arith.select %16, %63, %68 : vector<2x128xi1>, vector<2x128xf32>
    %70 = vector.extract_strided_slice %69 {offsets = [0, 0], sizes = [2, 32], strides = [1, 1]} : vector<2x128xf32> to vector<2x32xf32>
    %71 = vector.extract_strided_slice %69 {offsets = [0, 32], sizes = [2, 32], strides = [1, 1]} : vector<2x128xf32> to vector<2x32xf32>
    %72 = vector.extract_strided_slice %69 {offsets = [0, 64], sizes = [2, 32], strides = [1, 1]} : vector<2x128xf32> to vector<2x32xf32>
    %73 = vector.extract_strided_slice %69 {offsets = [0, 96], sizes = [2, 32], strides = [1, 1]} : vector<2x128xf32> to vector<2x32xf32>
    %74 = arith.mulf %71, %56 : vector<2x32xf32>
    %75 = arith.mulf %70, %72 : vector<2x32xf32>
    %76 = arith.addf %74, %75 : vector<2x32xf32>
    %77 = math.tanh %76 : vector<2x32xf32>
    %78 = arith.mulf %73, %77 : vector<2x32xf32>
    %79 = vector.extract_strided_slice %6 {offsets = [0, 3, 0], sizes = [2, 1, 128], strides = [1, 1, 1]} : vector<2x8x128xf32> to vector<2x1x128xf32>
    %80 = vector.shape_cast %79 : vector<2x1x128xf32> to vector<2x128xf32>
    %cst_18 = arith.constant dense<0.000000e+00> : vector<2x128xf32>
    %81 = tpu.matmul %78, %9, %cst_18 {dimension_numbers = #tpu.dot_dimension_numbers<[1], [0], [0], [1], [0, 0, 1, 1], [], []>} : vector<2x32xf32>, vector<32x128xf32>, vector<2x128xf32> -> vector<2x128xf32>
    %82 = arith.addf %80, %81 : vector<2x128xf32>
    %83 = math.tanh %82 : vector<2x128xf32>
    %84 = arith.negf %82 : vector<2x128xf32>
    %85 = math.exp %84 : vector<2x128xf32>
    %cst_19 = arith.constant 1.000000e+00 : f32
    %86 = vector.broadcast %cst_19 : f32 to vector<2x128xf32>
    %87 = arith.addf %86, %85 : vector<2x128xf32>
    %88 = arith.divf %86, %87 : vector<2x128xf32>
    %89 = arith.select %16, %83, %88 : vector<2x128xi1>, vector<2x128xf32>
    %90 = vector.extract_strided_slice %89 {offsets = [0, 0], sizes = [2, 32], strides = [1, 1]} : vector<2x128xf32> to vector<2x32xf32>
    %91 = vector.extract_strided_slice %89 {offsets = [0, 32], sizes = [2, 32], strides = [1, 1]} : vector<2x128xf32> to vector<2x32xf32>
    %92 = vector.extract_strided_slice %89 {offsets = [0, 64], sizes = [2, 32], strides = [1, 1]} : vector<2x128xf32> to vector<2x32xf32>
    %93 = vector.extract_strided_slice %89 {offsets = [0, 96], sizes = [2, 32], strides = [1, 1]} : vector<2x128xf32> to vector<2x32xf32>
    %94 = arith.mulf %91, %76 : vector<2x32xf32>
    %95 = arith.mulf %90, %92 : vector<2x32xf32>
    %96 = arith.addf %94, %95 : vector<2x32xf32>
    %97 = math.tanh %96 : vector<2x32xf32>
    %98 = arith.mulf %93, %97 : vector<2x32xf32>
    %99 = vector.extract_strided_slice %6 {offsets = [0, 4, 0], sizes = [2, 1, 128], strides = [1, 1, 1]} : vector<2x8x128xf32> to vector<2x1x128xf32>
    %100 = vector.shape_cast %99 : vector<2x1x128xf32> to vector<2x128xf32>
    %cst_20 = arith.constant dense<0.000000e+00> : vector<2x128xf32>
    %101 = tpu.matmul %98, %9, %cst_20 {dimension_numbers = #tpu.dot_dimension_numbers<[1], [0], [0], [1], [0, 0, 1, 1], [], []>} : vector<2x32xf32>, vector<32x128xf32>, vector<2x128xf32> -> vector<2x128xf32>
    %102 = arith.addf %100, %101 : vector<2x128xf32>
    %103 = math.tanh %102 : vector<2x128xf32>
    %104 = arith.negf %102 : vector<2x128xf32>
    %105 = math.exp %104 : vector<2x128xf32>
    %cst_21 = arith.constant 1.000000e+00 : f32
    %106 = vector.broadcast %cst_21 : f32 to vector<2x128xf32>
    %107 = arith.addf %106, %105 : vector<2x128xf32>
    %108 = arith.divf %106, %107 : vector<2x128xf32>
    %109 = arith.select %16, %103, %108 : vector<2x128xi1>, vector<2x128xf32>
    %110 = vector.extract_strided_slice %109 {offsets = [0, 0], sizes = [2, 32], strides = [1, 1]} : vector<2x128xf32> to vector<2x32xf32>
    %111 = vector.extract_strided_slice %109 {offsets = [0, 32], sizes = [2, 32], strides = [1, 1]} : vector<2x128xf32> to vector<2x32xf32>
    %112 = vector.extract_strided_slice %109 {offsets = [0, 64], sizes = [2, 32], strides = [1, 1]} : vector<2x128xf32> to vector<2x32xf32>
    %113 = vector.extract_strided_slice %109 {offsets = [0, 96], sizes = [2, 32], strides = [1, 1]} : vector<2x128xf32> to vector<2x32xf32>
    %114 = arith.mulf %111, %96 : vector<2x32xf32>
    %115 = arith.mulf %110, %112 : vector<2x32xf32>
    %116 = arith.addf %114, %115 : vector<2x32xf32>
    %117 = math.tanh %116 : vector<2x32xf32>
    %118 = arith.mulf %113, %117 : vector<2x32xf32>
    %119 = vector.extract_strided_slice %6 {offsets = [0, 5, 0], sizes = [2, 1, 128], strides = [1, 1, 1]} : vector<2x8x128xf32> to vector<2x1x128xf32>
    %120 = vector.shape_cast %119 : vector<2x1x128xf32> to vector<2x128xf32>
    %cst_22 = arith.constant dense<0.000000e+00> : vector<2x128xf32>
    %121 = tpu.matmul %118, %9, %cst_22 {dimension_numbers = #tpu.dot_dimension_numbers<[1], [0], [0], [1], [0, 0, 1, 1], [], []>} : vector<2x32xf32>, vector<32x128xf32>, vector<2x128xf32> -> vector<2x128xf32>
    %122 = arith.addf %120, %121 : vector<2x128xf32>
    %123 = math.tanh %122 : vector<2x128xf32>
    %124 = arith.negf %122 : vector<2x128xf32>
    %125 = math.exp %124 : vector<2x128xf32>
    %cst_23 = arith.constant 1.000000e+00 : f32
    %126 = vector.broadcast %cst_23 : f32 to vector<2x128xf32>
    %127 = arith.addf %126, %125 : vector<2x128xf32>
    %128 = arith.divf %126, %127 : vector<2x128xf32>
    %129 = arith.select %16, %123, %128 : vector<2x128xi1>, vector<2x128xf32>
    %130 = vector.extract_strided_slice %129 {offsets = [0, 0], sizes = [2, 32], strides = [1, 1]} : vector<2x128xf32> to vector<2x32xf32>
    %131 = vector.extract_strided_slice %129 {offsets = [0, 32], sizes = [2, 32], strides = [1, 1]} : vector<2x128xf32> to vector<2x32xf32>
    %132 = vector.extract_strided_slice %129 {offsets = [0, 64], sizes = [2, 32], strides = [1, 1]} : vector<2x128xf32> to vector<2x32xf32>
    %133 = vector.extract_strided_slice %129 {offsets = [0, 96], sizes = [2, 32], strides = [1, 1]} : vector<2x128xf32> to vector<2x32xf32>
    %134 = arith.mulf %131, %116 : vector<2x32xf32>
    %135 = arith.mulf %130, %132 : vector<2x32xf32>
    %136 = arith.addf %134, %135 : vector<2x32xf32>
    %137 = math.tanh %136 : vector<2x32xf32>
    %138 = arith.mulf %133, %137 : vector<2x32xf32>
    %139 = vector.extract_strided_slice %6 {offsets = [0, 6, 0], sizes = [2, 1, 128], strides = [1, 1, 1]} : vector<2x8x128xf32> to vector<2x1x128xf32>
    %140 = vector.shape_cast %139 : vector<2x1x128xf32> to vector<2x128xf32>
    %cst_24 = arith.constant dense<0.000000e+00> : vector<2x128xf32>
    %141 = tpu.matmul %138, %9, %cst_24 {dimension_numbers = #tpu.dot_dimension_numbers<[1], [0], [0], [1], [0, 0, 1, 1], [], []>} : vector<2x32xf32>, vector<32x128xf32>, vector<2x128xf32> -> vector<2x128xf32>
    %142 = arith.addf %140, %141 : vector<2x128xf32>
    %143 = math.tanh %142 : vector<2x128xf32>
    %144 = arith.negf %142 : vector<2x128xf32>
    %145 = math.exp %144 : vector<2x128xf32>
    %cst_25 = arith.constant 1.000000e+00 : f32
    %146 = vector.broadcast %cst_25 : f32 to vector<2x128xf32>
    %147 = arith.addf %146, %145 : vector<2x128xf32>
    %148 = arith.divf %146, %147 : vector<2x128xf32>
    %149 = arith.select %16, %143, %148 : vector<2x128xi1>, vector<2x128xf32>
    %150 = vector.extract_strided_slice %149 {offsets = [0, 0], sizes = [2, 32], strides = [1, 1]} : vector<2x128xf32> to vector<2x32xf32>
    %151 = vector.extract_strided_slice %149 {offsets = [0, 32], sizes = [2, 32], strides = [1, 1]} : vector<2x128xf32> to vector<2x32xf32>
    %152 = vector.extract_strided_slice %149 {offsets = [0, 64], sizes = [2, 32], strides = [1, 1]} : vector<2x128xf32> to vector<2x32xf32>
    %153 = vector.extract_strided_slice %149 {offsets = [0, 96], sizes = [2, 32], strides = [1, 1]} : vector<2x128xf32> to vector<2x32xf32>
    %154 = arith.mulf %151, %136 : vector<2x32xf32>
    %155 = arith.mulf %150, %152 : vector<2x32xf32>
    %156 = arith.addf %154, %155 : vector<2x32xf32>
    %157 = math.tanh %156 : vector<2x32xf32>
    %158 = arith.mulf %153, %157 : vector<2x32xf32>
    %159 = vector.extract_strided_slice %6 {offsets = [0, 7, 0], sizes = [2, 1, 128], strides = [1, 1, 1]} : vector<2x8x128xf32> to vector<2x1x128xf32>
    %160 = vector.shape_cast %159 : vector<2x1x128xf32> to vector<2x128xf32>
    %cst_26 = arith.constant dense<0.000000e+00> : vector<2x128xf32>
    %161 = tpu.matmul %158, %9, %cst_26 {dimension_numbers = #tpu.dot_dimension_numbers<[1], [0], [0], [1], [0, 0, 1, 1], [], []>} : vector<2x32xf32>, vector<32x128xf32>, vector<2x128xf32> -> vector<2x128xf32>
    %162 = arith.addf %160, %161 : vector<2x128xf32>
    %163 = math.tanh %162 : vector<2x128xf32>
    %164 = arith.negf %162 : vector<2x128xf32>
    %165 = math.exp %164 : vector<2x128xf32>
    %cst_27 = arith.constant 1.000000e+00 : f32
    %166 = vector.broadcast %cst_27 : f32 to vector<2x128xf32>
    %167 = arith.addf %166, %165 : vector<2x128xf32>
    %168 = arith.divf %166, %167 : vector<2x128xf32>
    %169 = arith.select %16, %163, %168 : vector<2x128xi1>, vector<2x128xf32>
    %170 = vector.extract_strided_slice %169 {offsets = [0, 0], sizes = [2, 32], strides = [1, 1]} : vector<2x128xf32> to vector<2x32xf32>
    %171 = vector.extract_strided_slice %169 {offsets = [0, 32], sizes = [2, 32], strides = [1, 1]} : vector<2x128xf32> to vector<2x32xf32>
    %172 = vector.extract_strided_slice %169 {offsets = [0, 64], sizes = [2, 32], strides = [1, 1]} : vector<2x128xf32> to vector<2x32xf32>
    %173 = vector.extract_strided_slice %169 {offsets = [0, 96], sizes = [2, 32], strides = [1, 1]} : vector<2x128xf32> to vector<2x32xf32>
    %174 = arith.mulf %171, %156 : vector<2x32xf32>
    %175 = arith.mulf %170, %172 : vector<2x32xf32>
    %176 = arith.addf %174, %175 : vector<2x32xf32>
    %177 = math.tanh %176 : vector<2x32xf32>
    %178 = arith.mulf %173, %177 : vector<2x32xf32>
    %179 = vector.extract_strided_slice %8 {offsets = [0, 0, 0], sizes = [2, 1, 128], strides = [1, 1, 1]} : vector<2x8x128xf32> to vector<2x1x128xf32>
    %180 = vector.shape_cast %179 : vector<2x1x128xf32> to vector<2x128xf32>
    %cst_28 = arith.constant dense<0.000000e+00> : vector<2x128xf32>
    %181 = tpu.matmul %178, %10, %cst_28 {dimension_numbers = #tpu.dot_dimension_numbers<[1], [0], [0], [1], [0, 0, 1, 1], [], []>} : vector<2x32xf32>, vector<32x128xf32>, vector<2x128xf32> -> vector<2x128xf32>
    %182 = arith.addf %180, %181 : vector<2x128xf32>
    %183 = math.tanh %182 : vector<2x128xf32>
    %184 = arith.negf %182 : vector<2x128xf32>
    %185 = math.exp %184 : vector<2x128xf32>
    %cst_29 = arith.constant 1.000000e+00 : f32
    %186 = vector.broadcast %cst_29 : f32 to vector<2x128xf32>
    %187 = arith.addf %186, %185 : vector<2x128xf32>
    %188 = arith.divf %186, %187 : vector<2x128xf32>
    %189 = arith.select %16, %183, %188 : vector<2x128xi1>, vector<2x128xf32>
    %190 = vector.extract_strided_slice %189 {offsets = [0, 0], sizes = [2, 32], strides = [1, 1]} : vector<2x128xf32> to vector<2x32xf32>
    %191 = vector.extract_strided_slice %189 {offsets = [0, 32], sizes = [2, 32], strides = [1, 1]} : vector<2x128xf32> to vector<2x32xf32>
    %192 = vector.extract_strided_slice %189 {offsets = [0, 64], sizes = [2, 32], strides = [1, 1]} : vector<2x128xf32> to vector<2x32xf32>
    %193 = vector.extract_strided_slice %189 {offsets = [0, 96], sizes = [2, 32], strides = [1, 1]} : vector<2x128xf32> to vector<2x32xf32>
    %194 = arith.mulf %191, %176 : vector<2x32xf32>
    %195 = arith.mulf %190, %192 : vector<2x32xf32>
    %196 = arith.addf %194, %195 : vector<2x32xf32>
    %197 = math.tanh %196 : vector<2x32xf32>
    %198 = arith.mulf %193, %197 : vector<2x32xf32>
    %c0_30 = arith.constant 0 : index
    %c0_31 = arith.constant 0 : index
    %c0_32 = arith.constant 0 : index
    %199 = vector.load %arg8[%c0_30, %c0_31, %c0_32] : memref<2x8x32xf32, #tpu.memory_space<vmem>>, vector<2x1x32xf32>
    %200 = vector.shape_cast %199 : vector<2x1x32xf32> to vector<2x32xf32>
    %201 = vector.shape_cast %198 : vector<2x32xf32> to vector<2x1x32xf32>
    tpu.vector_store %arg8[%c0_30, %c0_31, %c0_32], %201 {strides = array<i32>} : memref<2x8x32xf32, #tpu.memory_space<vmem>>, vector<2x1x32xf32>,
    %202 = vector.extract_strided_slice %8 {offsets = [0, 1, 0], sizes = [2, 1, 128], strides = [1, 1, 1]} : vector<2x8x128xf32> to vector<2x1x128xf32>
    %203 = vector.shape_cast %202 : vector<2x1x128xf32> to vector<2x128xf32>
    %cst_33 = arith.constant dense<0.000000e+00> : vector<2x128xf32>
    %204 = tpu.matmul %198, %10, %cst_33 {dimension_numbers = #tpu.dot_dimension_numbers<[1], [0], [0], [1], [0, 0, 1, 1], [], []>} : vector<2x32xf32>, vector<32x128xf32>, vector<2x128xf32> -> vector<2x128xf32>
    %205 = arith.addf %203, %204 : vector<2x128xf32>
    %206 = math.tanh %205 : vector<2x128xf32>
    %207 = arith.negf %205 : vector<2x128xf32>
    %208 = math.exp %207 : vector<2x128xf32>
    %cst_34 = arith.constant 1.000000e+00 : f32
    %209 = vector.broadcast %cst_34 : f32 to vector<2x128xf32>
    %210 = arith.addf %209, %208 : vector<2x128xf32>
    %211 = arith.divf %209, %210 : vector<2x128xf32>
    %212 = arith.select %16, %206, %211 : vector<2x128xi1>, vector<2x128xf32>
    %213 = vector.extract_strided_slice %212 {offsets = [0, 0], sizes = [2, 32], strides = [1, 1]} : vector<2x128xf32> to vector<2x32xf32>
    %214 = vector.extract_strided_slice %212 {offsets = [0, 32], sizes = [2, 32], strides = [1, 1]} : vector<2x128xf32> to vector<2x32xf32>
    %215 = vector.extract_strided_slice %212 {offsets = [0, 64], sizes = [2, 32], strides = [1, 1]} : vector<2x128xf32> to vector<2x32xf32>
    %216 = vector.extract_strided_slice %212 {offsets = [0, 96], sizes = [2, 32], strides = [1, 1]} : vector<2x128xf32> to vector<2x32xf32>
    %217 = arith.mulf %214, %196 : vector<2x32xf32>
    %218 = arith.mulf %213, %215 : vector<2x32xf32>
    %219 = arith.addf %217, %218 : vector<2x32xf32>
    %220 = math.tanh %219 : vector<2x32xf32>
    %221 = arith.mulf %216, %220 : vector<2x32xf32>
    %c0_35 = arith.constant 0 : index
    %c1 = arith.constant 1 : index
    %c0_36 = arith.constant 0 : index
    %222 = vector.load %arg8[%c0_35, %c1, %c0_36] : memref<2x8x32xf32, #tpu.memory_space<vmem>>, vector<2x1x32xf32>
    %223 = vector.shape_cast %222 : vector<2x1x32xf32> to vector<2x32xf32>
    %224 = vector.shape_cast %221 : vector<2x32xf32> to vector<2x1x32xf32>
    tpu.vector_store %arg8[%c0_35, %c1, %c0_36], %224 {strides = array<i32>} : memref<2x8x32xf32, #tpu.memory_space<vmem>>, vector<2x1x32xf32>,
    %225 = vector.extract_strided_slice %8 {offsets = [0, 2, 0], sizes = [2, 1, 128], strides = [1, 1, 1]} : vector<2x8x128xf32> to vector<2x1x128xf32>
    %226 = vector.shape_cast %225 : vector<2x1x128xf32> to vector<2x128xf32>
    %cst_37 = arith.constant dense<0.000000e+00> : vector<2x128xf32>
    %227 = tpu.matmul %221, %10, %cst_37 {dimension_numbers = #tpu.dot_dimension_numbers<[1], [0], [0], [1], [0, 0, 1, 1], [], []>} : vector<2x32xf32>, vector<32x128xf32>, vector<2x128xf32> -> vector<2x128xf32>
    %228 = arith.addf %226, %227 : vector<2x128xf32>
    %229 = math.tanh %228 : vector<2x128xf32>
    %230 = arith.negf %228 : vector<2x128xf32>
    %231 = math.exp %230 : vector<2x128xf32>
    %cst_38 = arith.constant 1.000000e+00 : f32
    %232 = vector.broadcast %cst_38 : f32 to vector<2x128xf32>
    %233 = arith.addf %232, %231 : vector<2x128xf32>
    %234 = arith.divf %232, %233 : vector<2x128xf32>
    %235 = arith.select %16, %229, %234 : vector<2x128xi1>, vector<2x128xf32>
    %236 = vector.extract_strided_slice %235 {offsets = [0, 0], sizes = [2, 32], strides = [1, 1]} : vector<2x128xf32> to vector<2x32xf32>
    %237 = vector.extract_strided_slice %235 {offsets = [0, 32], sizes = [2, 32], strides = [1, 1]} : vector<2x128xf32> to vector<2x32xf32>
    %238 = vector.extract_strided_slice %235 {offsets = [0, 64], sizes = [2, 32], strides = [1, 1]} : vector<2x128xf32> to vector<2x32xf32>
    %239 = vector.extract_strided_slice %235 {offsets = [0, 96], sizes = [2, 32], strides = [1, 1]} : vector<2x128xf32> to vector<2x32xf32>
    %240 = arith.mulf %237, %219 : vector<2x32xf32>
    %241 = arith.mulf %236, %238 : vector<2x32xf32>
    %242 = arith.addf %240, %241 : vector<2x32xf32>
    %243 = math.tanh %242 : vector<2x32xf32>
    %244 = arith.mulf %239, %243 : vector<2x32xf32>
    %c0_39 = arith.constant 0 : index
    %c2 = arith.constant 2 : index
    %c0_40 = arith.constant 0 : index
    %245 = vector.load %arg8[%c0_39, %c2, %c0_40] : memref<2x8x32xf32, #tpu.memory_space<vmem>>, vector<2x1x32xf32>
    %246 = vector.shape_cast %245 : vector<2x1x32xf32> to vector<2x32xf32>
    %247 = vector.shape_cast %244 : vector<2x32xf32> to vector<2x1x32xf32>
    tpu.vector_store %arg8[%c0_39, %c2, %c0_40], %247 {strides = array<i32>} : memref<2x8x32xf32, #tpu.memory_space<vmem>>, vector<2x1x32xf32>,
    %248 = vector.extract_strided_slice %8 {offsets = [0, 3, 0], sizes = [2, 1, 128], strides = [1, 1, 1]} : vector<2x8x128xf32> to vector<2x1x128xf32>
    %249 = vector.shape_cast %248 : vector<2x1x128xf32> to vector<2x128xf32>
    %cst_41 = arith.constant dense<0.000000e+00> : vector<2x128xf32>
    %250 = tpu.matmul %244, %10, %cst_41 {dimension_numbers = #tpu.dot_dimension_numbers<[1], [0], [0], [1], [0, 0, 1, 1], [], []>} : vector<2x32xf32>, vector<32x128xf32>, vector<2x128xf32> -> vector<2x128xf32>
    %251 = arith.addf %249, %250 : vector<2x128xf32>
    %252 = math.tanh %251 : vector<2x128xf32>
    %253 = arith.negf %251 : vector<2x128xf32>
    %254 = math.exp %253 : vector<2x128xf32>
    %cst_42 = arith.constant 1.000000e+00 : f32
    %255 = vector.broadcast %cst_42 : f32 to vector<2x128xf32>
    %256 = arith.addf %255, %254 : vector<2x128xf32>
    %257 = arith.divf %255, %256 : vector<2x128xf32>
    %258 = arith.select %16, %252, %257 : vector<2x128xi1>, vector<2x128xf32>
    %259 = vector.extract_strided_slice %258 {offsets = [0, 0], sizes = [2, 32], strides = [1, 1]} : vector<2x128xf32> to vector<2x32xf32>
    %260 = vector.extract_strided_slice %258 {offsets = [0, 32], sizes = [2, 32], strides = [1, 1]} : vector<2x128xf32> to vector<2x32xf32>
    %261 = vector.extract_strided_slice %258 {offsets = [0, 64], sizes = [2, 32], strides = [1, 1]} : vector<2x128xf32> to vector<2x32xf32>
    %262 = vector.extract_strided_slice %258 {offsets = [0, 96], sizes = [2, 32], strides = [1, 1]} : vector<2x128xf32> to vector<2x32xf32>
    %263 = arith.mulf %260, %242 : vector<2x32xf32>
    %264 = arith.mulf %259, %261 : vector<2x32xf32>
    %265 = arith.addf %263, %264 : vector<2x32xf32>
    %266 = math.tanh %265 : vector<2x32xf32>
    %267 = arith.mulf %262, %266 : vector<2x32xf32>
    %c0_43 = arith.constant 0 : index
    %c3 = arith.constant 3 : index
    %c0_44 = arith.constant 0 : index
    %268 = vector.load %arg8[%c0_43, %c3, %c0_44] : memref<2x8x32xf32, #tpu.memory_space<vmem>>, vector<2x1x32xf32>
    %269 = vector.shape_cast %268 : vector<2x1x32xf32> to vector<2x32xf32>
    %270 = vector.shape_cast %267 : vector<2x32xf32> to vector<2x1x32xf32>
    tpu.vector_store %arg8[%c0_43, %c3, %c0_44], %270 {strides = array<i32>} : memref<2x8x32xf32, #tpu.memory_space<vmem>>, vector<2x1x32xf32>,
    %271 = vector.extract_strided_slice %8 {offsets = [0, 4, 0], sizes = [2, 1, 128], strides = [1, 1, 1]} : vector<2x8x128xf32> to vector<2x1x128xf32>
    %272 = vector.shape_cast %271 : vector<2x1x128xf32> to vector<2x128xf32>
    %cst_45 = arith.constant dense<0.000000e+00> : vector<2x128xf32>
    %273 = tpu.matmul %267, %10, %cst_45 {dimension_numbers = #tpu.dot_dimension_numbers<[1], [0], [0], [1], [0, 0, 1, 1], [], []>} : vector<2x32xf32>, vector<32x128xf32>, vector<2x128xf32> -> vector<2x128xf32>
    %274 = arith.addf %272, %273 : vector<2x128xf32>
    %275 = math.tanh %274 : vector<2x128xf32>
    %276 = arith.negf %274 : vector<2x128xf32>
    %277 = math.exp %276 : vector<2x128xf32>
    %cst_46 = arith.constant 1.000000e+00 : f32
    %278 = vector.broadcast %cst_46 : f32 to vector<2x128xf32>
    %279 = arith.addf %278, %277 : vector<2x128xf32>
    %280 = arith.divf %278, %279 : vector<2x128xf32>
    %281 = arith.select %16, %275, %280 : vector<2x128xi1>, vector<2x128xf32>
    %282 = vector.extract_strided_slice %281 {offsets = [0, 0], sizes = [2, 32], strides = [1, 1]} : vector<2x128xf32> to vector<2x32xf32>
    %283 = vector.extract_strided_slice %281 {offsets = [0, 32], sizes = [2, 32], strides = [1, 1]} : vector<2x128xf32> to vector<2x32xf32>
    %284 = vector.extract_strided_slice %281 {offsets = [0, 64], sizes = [2, 32], strides = [1, 1]} : vector<2x128xf32> to vector<2x32xf32>
    %285 = vector.extract_strided_slice %281 {offsets = [0, 96], sizes = [2, 32], strides = [1, 1]} : vector<2x128xf32> to vector<2x32xf32>
    %286 = arith.mulf %283, %265 : vector<2x32xf32>
    %287 = arith.mulf %282, %284 : vector<2x32xf32>
    %288 = arith.addf %286, %287 : vector<2x32xf32>
    %289 = math.tanh %288 : vector<2x32xf32>
    %290 = arith.mulf %285, %289 : vector<2x32xf32>
    %c0_47 = arith.constant 0 : index
    %c4 = arith.constant 4 : index
    %c0_48 = arith.constant 0 : index
    %291 = vector.load %arg8[%c0_47, %c4, %c0_48] : memref<2x8x32xf32, #tpu.memory_space<vmem>>, vector<2x1x32xf32>
    %292 = vector.shape_cast %291 : vector<2x1x32xf32> to vector<2x32xf32>
    %293 = vector.shape_cast %290 : vector<2x32xf32> to vector<2x1x32xf32>
    tpu.vector_store %arg8[%c0_47, %c4, %c0_48], %293 {strides = array<i32>} : memref<2x8x32xf32, #tpu.memory_space<vmem>>, vector<2x1x32xf32>,
    %294 = vector.extract_strided_slice %8 {offsets = [0, 5, 0], sizes = [2, 1, 128], strides = [1, 1, 1]} : vector<2x8x128xf32> to vector<2x1x128xf32>
    %295 = vector.shape_cast %294 : vector<2x1x128xf32> to vector<2x128xf32>
    %cst_49 = arith.constant dense<0.000000e+00> : vector<2x128xf32>
    %296 = tpu.matmul %290, %10, %cst_49 {dimension_numbers = #tpu.dot_dimension_numbers<[1], [0], [0], [1], [0, 0, 1, 1], [], []>} : vector<2x32xf32>, vector<32x128xf32>, vector<2x128xf32> -> vector<2x128xf32>
    %297 = arith.addf %295, %296 : vector<2x128xf32>
    %298 = math.tanh %297 : vector<2x128xf32>
    %299 = arith.negf %297 : vector<2x128xf32>
    %300 = math.exp %299 : vector<2x128xf32>
    %cst_50 = arith.constant 1.000000e+00 : f32
    %301 = vector.broadcast %cst_50 : f32 to vector<2x128xf32>
    %302 = arith.addf %301, %300 : vector<2x128xf32>
    %303 = arith.divf %301, %302 : vector<2x128xf32>
    %304 = arith.select %16, %298, %303 : vector<2x128xi1>, vector<2x128xf32>
    %305 = vector.extract_strided_slice %304 {offsets = [0, 0], sizes = [2, 32], strides = [1, 1]} : vector<2x128xf32> to vector<2x32xf32>
    %306 = vector.extract_strided_slice %304 {offsets = [0, 32], sizes = [2, 32], strides = [1, 1]} : vector<2x128xf32> to vector<2x32xf32>
    %307 = vector.extract_strided_slice %304 {offsets = [0, 64], sizes = [2, 32], strides = [1, 1]} : vector<2x128xf32> to vector<2x32xf32>
    %308 = vector.extract_strided_slice %304 {offsets = [0, 96], sizes = [2, 32], strides = [1, 1]} : vector<2x128xf32> to vector<2x32xf32>
    %309 = arith.mulf %306, %288 : vector<2x32xf32>
    %310 = arith.mulf %305, %307 : vector<2x32xf32>
    %311 = arith.addf %309, %310 : vector<2x32xf32>
    %312 = math.tanh %311 : vector<2x32xf32>
    %313 = arith.mulf %308, %312 : vector<2x32xf32>
    %c0_51 = arith.constant 0 : index
    %c5 = arith.constant 5 : index
    %c0_52 = arith.constant 0 : index
    %314 = vector.load %arg8[%c0_51, %c5, %c0_52] : memref<2x8x32xf32, #tpu.memory_space<vmem>>, vector<2x1x32xf32>
    %315 = vector.shape_cast %314 : vector<2x1x32xf32> to vector<2x32xf32>
    %316 = vector.shape_cast %313 : vector<2x32xf32> to vector<2x1x32xf32>
    tpu.vector_store %arg8[%c0_51, %c5, %c0_52], %316 {strides = array<i32>} : memref<2x8x32xf32, #tpu.memory_space<vmem>>, vector<2x1x32xf32>,
    %317 = vector.extract_strided_slice %8 {offsets = [0, 6, 0], sizes = [2, 1, 128], strides = [1, 1, 1]} : vector<2x8x128xf32> to vector<2x1x128xf32>
    %318 = vector.shape_cast %317 : vector<2x1x128xf32> to vector<2x128xf32>
    %cst_53 = arith.constant dense<0.000000e+00> : vector<2x128xf32>
    %319 = tpu.matmul %313, %10, %cst_53 {dimension_numbers = #tpu.dot_dimension_numbers<[1], [0], [0], [1], [0, 0, 1, 1], [], []>} : vector<2x32xf32>, vector<32x128xf32>, vector<2x128xf32> -> vector<2x128xf32>
    %320 = arith.addf %318, %319 : vector<2x128xf32>
    %321 = math.tanh %320 : vector<2x128xf32>
    %322 = arith.negf %320 : vector<2x128xf32>
    %323 = math.exp %322 : vector<2x128xf32>
    %cst_54 = arith.constant 1.000000e+00 : f32
    %324 = vector.broadcast %cst_54 : f32 to vector<2x128xf32>
    %325 = arith.addf %324, %323 : vector<2x128xf32>
    %326 = arith.divf %324, %325 : vector<2x128xf32>
    %327 = arith.select %16, %321, %326 : vector<2x128xi1>, vector<2x128xf32>
    %328 = vector.extract_strided_slice %327 {offsets = [0, 0], sizes = [2, 32], strides = [1, 1]} : vector<2x128xf32> to vector<2x32xf32>
    %329 = vector.extract_strided_slice %327 {offsets = [0, 32], sizes = [2, 32], strides = [1, 1]} : vector<2x128xf32> to vector<2x32xf32>
    %330 = vector.extract_strided_slice %327 {offsets = [0, 64], sizes = [2, 32], strides = [1, 1]} : vector<2x128xf32> to vector<2x32xf32>
    %331 = vector.extract_strided_slice %327 {offsets = [0, 96], sizes = [2, 32], strides = [1, 1]} : vector<2x128xf32> to vector<2x32xf32>
    %332 = arith.mulf %329, %311 : vector<2x32xf32>
    %333 = arith.mulf %328, %330 : vector<2x32xf32>
    %334 = arith.addf %332, %333 : vector<2x32xf32>
    %335 = math.tanh %334 : vector<2x32xf32>
    %336 = arith.mulf %331, %335 : vector<2x32xf32>
    %c0_55 = arith.constant 0 : index
    %c6 = arith.constant 6 : index
    %c0_56 = arith.constant 0 : index
    %337 = vector.load %arg8[%c0_55, %c6, %c0_56] : memref<2x8x32xf32, #tpu.memory_space<vmem>>, vector<2x1x32xf32>
    %338 = vector.shape_cast %337 : vector<2x1x32xf32> to vector<2x32xf32>
    %339 = vector.shape_cast %336 : vector<2x32xf32> to vector<2x1x32xf32>
    tpu.vector_store %arg8[%c0_55, %c6, %c0_56], %339 {strides = array<i32>} : memref<2x8x32xf32, #tpu.memory_space<vmem>>, vector<2x1x32xf32>,
    %340 = vector.extract_strided_slice %8 {offsets = [0, 7, 0], sizes = [2, 1, 128], strides = [1, 1, 1]} : vector<2x8x128xf32> to vector<2x1x128xf32>
    %341 = vector.shape_cast %340 : vector<2x1x128xf32> to vector<2x128xf32>
    %cst_57 = arith.constant dense<0.000000e+00> : vector<2x128xf32>
    %342 = tpu.matmul %336, %10, %cst_57 {dimension_numbers = #tpu.dot_dimension_numbers<[1], [0], [0], [1], [0, 0, 1, 1], [], []>} : vector<2x32xf32>, vector<32x128xf32>, vector<2x128xf32> -> vector<2x128xf32>
    %343 = arith.addf %341, %342 : vector<2x128xf32>
    %344 = math.tanh %343 : vector<2x128xf32>
    %345 = arith.negf %343 : vector<2x128xf32>
    %346 = math.exp %345 : vector<2x128xf32>
    %cst_58 = arith.constant 1.000000e+00 : f32
    %347 = vector.broadcast %cst_58 : f32 to vector<2x128xf32>
    %348 = arith.addf %347, %346 : vector<2x128xf32>
    %349 = arith.divf %347, %348 : vector<2x128xf32>
    %350 = arith.select %16, %344, %349 : vector<2x128xi1>, vector<2x128xf32>
    %351 = vector.extract_strided_slice %350 {offsets = [0, 0], sizes = [2, 32], strides = [1, 1]} : vector<2x128xf32> to vector<2x32xf32>
    %352 = vector.extract_strided_slice %350 {offsets = [0, 32], sizes = [2, 32], strides = [1, 1]} : vector<2x128xf32> to vector<2x32xf32>
    %353 = vector.extract_strided_slice %350 {offsets = [0, 64], sizes = [2, 32], strides = [1, 1]} : vector<2x128xf32> to vector<2x32xf32>
    %354 = vector.extract_strided_slice %350 {offsets = [0, 96], sizes = [2, 32], strides = [1, 1]} : vector<2x128xf32> to vector<2x32xf32>
    %355 = arith.mulf %352, %334 : vector<2x32xf32>
    %356 = arith.mulf %351, %353 : vector<2x32xf32>
    %357 = arith.addf %355, %356 : vector<2x32xf32>
    %358 = math.tanh %357 : vector<2x32xf32>
    %359 = arith.mulf %354, %358 : vector<2x32xf32>
    %c0_59 = arith.constant 0 : index
    %c7 = arith.constant 7 : index
    %c0_60 = arith.constant 0 : index
    %360 = vector.load %arg8[%c0_59, %c7, %c0_60] : memref<2x8x32xf32, #tpu.memory_space<vmem>>, vector<2x1x32xf32>
    %361 = vector.shape_cast %360 : vector<2x1x32xf32> to vector<2x32xf32>
    %362 = vector.shape_cast %359 : vector<2x32xf32> to vector<2x1x32xf32>
    tpu.vector_store %arg8[%c0_59, %c7, %c0_60], %362 {strides = array<i32>} : memref<2x8x32xf32, #tpu.memory_space<vmem>>, vector<2x1x32xf32>,
    %c0_61 = arith.constant 0 : index
    %c0_62 = arith.constant 0 : index
    %c0_63 = arith.constant 0 : index
    %363 = vector.load %arg8[%c0_61, %c0_62, %c0_63] : memref<2x8x32xf32, #tpu.memory_space<vmem>>, vector<2x8x32xf32>
    %364 = vector.shape_cast %363 : vector<2x8x32xf32> to vector<16x32xf32>
    %c0_64 = arith.constant 0 : index
    %c0_65 = arith.constant 0 : index
    %365 = vector.load %arg5[%c0_64, %c0_65] : memref<32x1xf32, #tpu.memory_space<vmem>>, vector<32x1xf32>
    %cst_66 = arith.constant dense<0.000000e+00> : vector<16x1xf32>
    %366 = tpu.matmul %364, %365, %cst_66 {dimension_numbers = #tpu.dot_dimension_numbers<[1], [0], [0], [1], [0, 0, 1, 1], [], []>} : vector<16x32xf32>, vector<32x1xf32>, vector<16x1xf32> -> vector<16x1xf32>
    %c0_67 = arith.constant 0 : index
    %c0_68 = arith.constant 0 : index
    %367 = vector.load %arg6[%c0_67, %c0_68] : memref<1x1xf32, #tpu.memory_space<vmem>>, vector<1x1xf32>
    %368 = vector.broadcast %367 : vector<1x1xf32> to vector<16x1xf32>
    %369 = arith.addf %366, %368 : vector<16x1xf32>
    %370 = vector.shape_cast %369 : vector<16x1xf32> to vector<2x8xf32>
    %c0_69 = arith.constant 0 : index
    %c0_70 = arith.constant 0 : index
    %371 = vector.load %arg7[%c0_69, %c0_70] : memref<2x8xf32, #tpu.memory_space<vmem>>, vector<2x8xf32>
    tpu.vector_store %arg7[%c0_69, %c0_70], %370 {strides = array<i32>} : memref<2x8xf32, #tpu.memory_space<vmem>>, vector<2x8xf32>,
    return
  }
}

</mosaic_0001>

<llo_original>
// kernel: seq2seq_forward.1
$region0: #{seq2seq_forward.1}
  #allocation0 [shape = 'u32[]', space=smem, size = 0x4, offset = 0x4, fixed_abs, tag = 'smem constant byte address 0x4 - core index']
  #allocation1 [shape = 'u32[144,128]{1,0:T(1,128)}', space=vmem, size = 0x12000, scoped, tag = 'internal scratch']
  #allocation2 [shape = 'f32[2,8,32]{2,1,0:T(8,128)}', space=vmem, size = 0x2000, scoped, tag = 'scratch operand']
  #allocation3 [shape = 'f32[1,1]{1,0:T(1,128)S(1)}', space=vmem, size = 0x200, scoped, tag = 'scoped memory for seq2seq_forward.1']
  %s0 = inlined_call_operand.vmem [shape: f32[32,9], index: 0, kind: input, shape index: {}]
  %s1 = inlined_call_operand.vmem [shape: f32[9,34], index: 1, kind: input, shape index: {}]
  %s2 = inlined_call_operand.vmem [shape: f32[34,128], index: 2, kind: input, shape index: {}]
  %s3 = inlined_call_operand.vmem [shape: f32[32,128], index: 3, kind: input, shape index: {}]
  %s4 = inlined_call_operand.vmem [shape: f32[32,128], index: 4, kind: input, shape index: {}]
  %s5 = inlined_call_operand.vmem [shape: f32[32,1], index: 5, kind: input, shape index: {}]
  %s6 = inlined_call_operand.<no memory space> [shape: f32[1,1], index: 6, kind: input, shape index: {}]
  %s7 = inlined_call_operand.hbm [shape: f32[2,8], index: 7, kind: output, shape index: {}]
  %s8 = sld [smem:[#allocation0]]
  $region38: #{seq2seq_forward.1} parent=0
    _
  %s10 = ssub.s32 1, %s8
  %s11 = scalar_select 0, %s10, %s8
  %v12 = vstv %s6
  %13 = vst [vmem:[#allocation3] sm:$0x1] %v12
  $region1: #{seq2seq_forward.1} parent=0
    #allocation4 [shape = 'u8[1024]{0}', space=vmem, size = 0x400, scoped, tag = 'output window, operand 0, single buffered']
    #allocation5 [shape = 's32[1]{0}', space=sflag, size = 0x4, scoped, tag = 'scoped memory for seq2seq_forward.1']
    %14 = vsyncpa [#allocation5], 0
    // Predicated region
    $region2: #{seq2seq_forward.1} parent=1 // pred_check
      _
    $region3: #{seq2seq_forward.1} parent=1 // pred_check_branch
      %16 = sbr.rel (0) target = $region5
    $region4: #{seq2seq_forward.1} parent=1 // pred_region
      _
    $region5: #{seq2seq_forward.1} parent=1 // pred_fallthru
      _
    // Predicated region
    $region6: #{seq2seq_forward.1} parent=1 // pred_check
      _
    $region7: #{seq2seq_forward.1} parent=1 // pred_check_branch
      %18 = sbr.rel (0) target = $region9
    $region8: #{seq2seq_forward.1} parent=1 // pred_region
      _
    $region9: #{seq2seq_forward.1} parent=1 // pred_fallthru
      _
    // Predicated region
    $region10: #{seq2seq_forward.1} parent=1 // pred_check
      _
    $region11: #{seq2seq_forward.1} parent=1 // pred_check_branch
      %20 = sbr.rel (0) target = $region13
    $region12: #{seq2seq_forward.1} parent=1 // pred_region
      _
    $region13: #{seq2seq_forward.1} parent=1 // pred_fallthru
      _
    // Predicated region
    $region14: #{seq2seq_forward.1} parent=1 // pred_check
      _
    $region15: #{seq2seq_forward.1} parent=1 // pred_check_branch
      %22 = sbr.rel (0) target = $region17
    $region16: #{seq2seq_forward.1} parent=1 // pred_region
      _
    $region17: #{seq2seq_forward.1} parent=1 // pred_fallthru
      _
    // Predicated region
    $region18: #{seq2seq_forward.1} parent=1 // pred_check
      _
    $region19: #{seq2seq_forward.1} parent=1 // pred_check_branch
      %24 = sbr.rel (0) target = $region21
    $region20: #{seq2seq_forward.1} parent=1 // pred_region
      _
    $region21: #{seq2seq_forward.1} parent=1 // pred_fallthru
      _
    // Predicated region
    $region22: #{seq2seq_forward.1} parent=1 // pred_check
      _
    $region23: #{seq2seq_forward.1} parent=1 // pred_check_branch
      %26 = sbr.rel (0) target = $region25
    $region24: #{seq2seq_forward.1} parent=1 // pred_region
      _
    $region25: #{seq2seq_forward.1} parent=1 // pred_fallthru
      _
    // Predicated region
    $region26: #{seq2seq_forward.1} parent=1 // pred_check
      _
    $region27: #{seq2seq_forward.1} parent=1 // pred_check_branch
      %28 = sbr.rel (0) target = $region29
    $region28: #{seq2seq_forward.1} parent=1 // pred_region
      _
    $region29: #{seq2seq_forward.1} parent=1 // pred_fallthru
      _
    %v29 = vld [vmem:[%s0] sm:$0xff]
    %v30 = vld [vmem:[%s0 + $0x8] sm:$0xff]
    %v31 = vld [vmem:[%s0 + $0x10] sm:$0xff]
    %v32 = vld [vmem:[%s0 + $0x18] sm:$0xff]
    %v33 = vld [vmem:[%s1] sm:$0xff]
    %v34 = vld [vmem:[%s1 + $0x8] sm:$0x1]
    %vm35 = vcmask 72704
    %v37 = vsel %vm35, %v29, 0
    %v40 = vsel %vm35, %v30, 0
    %v43 = vsel %vm35, %v31, 0
    %v46 = vsel %vm35, %v32, 0
    %vm48 = vcmask 1040384
    %v50 = vsel %vm48, %v34, 0
    %52 = vmatprep.subr.mxu0 0.0
    %53 = vmatpush1.msra.mxu0 %v33
    %54 = vmatprep.subr.mxu0 0.0
    %55 = vmatpush1.msra.mxu0 %v50
    %56 = vmatprep.subr.mxu0 0.0
    %57 = vmatpush1.msra.mxu0 0.0
    %58 = vmatprep.subr.mxu0 0.0
    %59 = vmatpush1.msra.mxu0 0.0
    %60 = vmatprep.subr.mxu0 0.0
    %61 = vmatpush1.msra.mxu0 0.0
    %62 = vmatprep.subr.mxu0 0.0
    %63 = vmatpush1.msra.mxu0 0.0
    %64 = vmatprep.subr.mxu0 0.0
    %65 = vmatpush1.msra.mxu0 0.0
    %66 = vmatprep.subr.mxu0 0.0
    %67 = vmatpush1.msra.mxu0 0.0
    %68 = vmatprep.subr.mxu0 0.0
    %69 = vmatpush1.msra.mxu0 0.0
    %70 = vmatprep.subr.mxu0 0.0
    %71 = vmatpush1.msra.mxu0 0.0
    %72 = vmatprep.subr.mxu0 0.0
    %73 = vmatpush1.msra.mxu0 0.0
    %74 = vmatprep.subr.mxu0 0.0
    %75 = vmatpush1.msra.mxu0 0.0
    %76 = vmatprep.subr.mxu0 0.0
    %77 = vmatpush1.msra.mxu0 0.0
    %78 = vmatprep.subr.mxu0 0.0
    %79 = vmatpush1.msra.mxu0 0.0
    %80 = vmatprep.subr.mxu0 0.0
    %81 = vmatpush1.msra.mxu0 0.0
    %82 = vmatprep.subr.mxu0 0.0
    %83 = vmatpush1.msra.mxu0 0.0
    %84 = vmatprep.subr.mxu0 0.0
    %85 = vmatpush1.msra.mxu0 0.0
    %86 = vmatprep.subr.mxu0 0.0
    %87 = vmatpush1.msra.mxu0 0.0
    %88 = vmatprep.subr.mxu0 0.0
    %89 = vmatpush1.msra.mxu0 0.0
    %90 = vmatprep.subr.mxu0 0.0
    %91 = vmatpush1.msra.mxu0 0.0
    %92 = vmatprep.subr.mxu0 0.0
    %93 = vmatpush1.msra.mxu0 0.0
    %94 = vmatprep.subr.mxu0 0.0
    %95 = vmatpush1.msra.mxu0 0.0
    %96 = vmatprep.subr.mxu0 0.0
    %97 = vmatpush1.msra.mxu0 0.0
    %98 = vmatprep.subr.mxu0 0.0
    %99 = vmatpush1.msra.mxu0 0.0
    %100 = vmatprep.subr.mxu0 0.0
    %101 = vmatpush1.msra.mxu0 0.0
    %102 = vmatprep.subr.mxu0 0.0
    %103 = vmatpush1.msra.mxu0 0.0
    %104 = vmatprep.subr.mxu0 0.0
    %105 = vmatpush1.msra.mxu0 0.0
    %106 = vmatprep.subr.mxu0 0.0
    %107 = vmatpush1.msra.mxu0 0.0
    %108 = vmatprep.subr.mxu0 0.0
    %109 = vmatpush1.msra.mxu0 0.0
    %110 = vmatprep.subr.mxu0 0.0
    %111 = vmatpush1.msra.mxu0 0.0
    %112 = vmatprep.subr.mxu0 0.0
    %113 = vmatpush1.msra.mxu0 0.0
    %114 = vmatprep.subr.mxu0 0.0
    %115 = vmatpush1.msra.mxu0 0.0
    %116 = vmatprep.mubr.f32.mxu0 0.0
    %117 = vmatmul.mubr.f32.gmra.mrb[0].mxu0 %v37
    %v118 = vpop.f32.mrb[0].mxu0
    %v119 = vadd.f32 0.0, %v118
    %v120 = vpop.f32.mrb[0].mxu0
    %121 = vmatprep.mubr.f32.mxu0 0.0
    %122 = vmatmul.mubr.f32.gmra.mrb[0].mxu0 %v40
    %v123 = vpop.f32.mrb[0].mxu0
    %v124 = vadd.f32 0.0, %v123
    %v125 = vpop.f32.mrb[0].mxu0
    %126 = vmatprep.mubr.f32.mxu0 0.0
    %127 = vmatmul.mubr.f32.gmra.mrb[0].mxu0 %v43
    %v128 = vpop.f32.mrb[0].mxu0
    %v129 = vadd.f32 0.0, %v128
    %v130 = vpop.f32.mrb[0].mxu0
    %131 = vmatprep.mubr.f32.mxu0 0.0
    %132 = vmatmul.mubr.f32.gmra.mrb[0].mxu0 %v46
    %v133 = vpop.f32.mrb[0].mxu0
    %v134 = vadd.f32 0.0, %v133
    %v135 = vpop.f32.mrb[0].mxu0
    %136 = vdwg.mxu0
    %v137 = vld [vmem:[%s2] sm:$0xff]
    %v138 = vld [vmem:[%s2 + $0x8] sm:$0xff]
    %v139 = vld [vmem:[%s2 + $0x10] sm:$0xff]
    %v140 = vld [vmem:[%s2 + $0x18] sm:$0xff]
    %v141 = vld [vmem:[%s2 + $0x20] sm:$0x3]
    %vm142 = vcmask 277504
    %v144 = vsel %vm142, %v119, 0
    %v147 = vsel %vm142, %v124, 0
    %v150 = vsel %vm142, %v129, 0
    %v153 = vsel %vm142, %v134, 0
    %vm155 = vcmask 1041408
    %v157 = vsel %vm155, %v141, 0
    %159 = vmatprep.subr.mxu0 0.0
    %160 = vmatpush1.msra.mxu0 %v137
    %161 = vmatprep.subr.mxu0 0.0
    %162 = vmatpush1.msra.mxu0 %v138
    %163 = vmatprep.subr.mxu0 0.0
    %164 = vmatpush1.msra.mxu0 %v139
    %165 = vmatprep.subr.mxu0 0.0
    %166 = vmatpush1.msra.mxu0 %v140
    %167 = vmatprep.subr.mxu0 0.0
    %168 = vmatpush1.msra.mxu0 %v157
    %169 = vmatprep.subr.mxu0 0.0
    %170 = vmatpush1.msra.mxu0 0.0
    %171 = vmatprep.subr.mxu0 0.0
    %172 = vmatpush1.msra.mxu0 0.0
    %173 = vmatprep.subr.mxu0 0.0
    %174 = vmatpush1.msra.mxu0 0.0
    %175 = vmatprep.subr.mxu0 0.0
    %176 = vmatpush1.msra.mxu0 0.0
    %177 = vmatprep.subr.mxu0 0.0
    %178 = vmatpush1.msra.mxu0 0.0
    %179 = vmatprep.subr.mxu0 0.0
    %180 = vmatpush1.msra.mxu0 0.0
    %181 = vmatprep.subr.mxu0 0.0
    %182 = vmatpush1.msra.mxu0 0.0
    %183 = vmatprep.subr.mxu0 0.0
    %184 = vmatpush1.msra.mxu0 0.0
    %185 = vmatprep.subr.mxu0 0.0
    %186 = vmatpush1.msra.mxu0 0.0
    %187 = vmatprep.subr.mxu0 0.0
    %188 = vmatpush1.msra.mxu0 0.0
    %189 = vmatprep.subr.mxu0 0.0
    %190 = vmatpush1.msra.mxu0 0.0
    %191 = vmatprep.subr.mxu0 0.0
    %192 = vmatpush1.msra.mxu0 0.0
    %193 = vmatprep.subr.mxu0 0.0
    %194 = vmatpush1.msra.mxu0 0.0
    %195 = vmatprep.subr.mxu0 0.0
    %196 = vmatpush1.msra.mxu0 0.0
    %197 = vmatprep.subr.mxu0 0.0
    %198 = vmatpush1.msra.mxu0 0.0
    %199 = vmatprep.subr.mxu0 0.0
    %200 = vmatpush1.msra.mxu0 0.0
    %201 = vmatprep.subr.mxu0 0.0
    %202 = vmatpush1.msra.mxu0 0.0
    %203 = vmatprep.subr.mxu0 0.0
    %204 = vmatpush1.msra.mxu0 0.0
    %205 = vmatprep.subr.mxu0 0.0
    %206 = vmatpush1.msra.mxu0 0.0
    %207 = vmatprep.subr.mxu0 0.0
    %208 = vmatpush1.msra.mxu0 0.0
    %209 = vmatprep.subr.mxu0 0.0
    %210 = vmatpush1.msra.mxu0 0.0
    %211 = vmatprep.subr.mxu0 0.0
    %212 = vmatpush1.msra.mxu0 0.0
    %213 = vmatprep.subr.mxu0 0.0
    %214 = vmatpush1.msra.mxu0 0.0
    %215 = vmatprep.subr.mxu0 0.0
    %216 = vmatpush1.msra.mxu0 0.0
    %217 = vmatprep.subr.mxu0 0.0
    %218 = vmatpush1.msra.mxu0 0.0
    %219 = vmatprep.subr.mxu0 0.0
    %220 = vmatpush1.msra.mxu0 0.0
    %221 = vmatprep.subr.mxu0 0.0
    %222 = vmatpush1.msra.mxu0 0.0
    %223 = vmatprep.mubr.f32.mxu0 0.0
    %224 = vmatmul.mubr.f32.gmra.mrb[0].mxu0 %v144
    %v225 = vpop.f32.mrb[0].mxu0
    %v226 = vadd.f32 0.0, %v225
    %v227 = vpop.f32.mrb[0].mxu0
    %228 = vmatprep.mubr.f32.mxu0 0.0
    %229 = vmatmul.mubr.f32.gmra.mrb[0].mxu0 %v147
    %v230 = vpop.f32.mrb[0].mxu0
    %v231 = vadd.f32 0.0, %v230
    %v232 = vpop.f32.mrb[0].mxu0
    %233 = vmatprep.mubr.f32.mxu0 0.0
    %234 = vmatmul.mubr.f32.gmra.mrb[0].mxu0 %v150
    %v235 = vpop.f32.mrb[0].mxu0
    %v236 = vadd.f32 0.0, %v235
    %v237 = vpop.f32.mrb[0].mxu0
    %238 = vmatprep.mubr.f32.mxu0 0.0
    %239 = vmatmul.mubr.f32.gmra.mrb[0].mxu0 %v153
    %v240 = vpop.f32.mrb[0].mxu0
    %v241 = vadd.f32 0.0, %v240
    %v242 = vpop.f32.mrb[0].mxu0
    %243 = vdwg.mxu0
    %v244 = vld [vmem:[%s3] sm:$0xff]
    %v245 = vld [vmem:[%s3 + $0x8] sm:$0xff]
    %v246 = vld [vmem:[%s3 + $0x10] sm:$0xff]
    %v247 = vld [vmem:[%s3 + $0x18] sm:$0xff]
    %v248 = vld [vmem:[%s4] sm:$0xff]
    %v249 = vld [vmem:[%s4 + $0x8] sm:$0xff]
    %v250 = vld [vmem:[%s4 + $0x10] sm:$0xff]
    %v251 = vld [vmem:[%s4 + $0x18] sm:$0xff]
    %v252 = vlaneseq
    %v253 = vand.u32 %v252, 127
    %vm254 = vcmp.ge.s32.totalorder %v253, 64
    %vm255 = vcmp.lt.s32.totalorder %v253, 96
    %vm256 = vmand %vm254, %vm255
    %vm257 = vcmask 261120
    %v259 = vsel %vm257, 0.0, 0
    %261 = vmatprep.subr.mxu0 0.0
    %262 = vmatpush1.msra.mxu0 %v244
    %263 = vmatprep.subr.mxu0 0.0
    %264 = vmatpush1.msra.mxu0 %v245
    %265 = vmatprep.subr.mxu0 0.0
    %266 = vmatpush1.msra.mxu0 %v246
    %267 = vmatprep.subr.mxu0 0.0
    %268 = vmatpush1.msra.mxu0 %v247
    %269 = vmatprep.subr.mxu0 0.0
    %270 = vmatpush1.msra.mxu0 0.0
    %271 = vmatprep.subr.mxu0 0.0
    %272 = vmatpush1.msra.mxu0 0.0
    %273 = vmatprep.subr.mxu0 0.0
    %274 = vmatpush1.msra.mxu0 0.0
    %275 = vmatprep.subr.mxu0 0.0
    %276 = vmatpush1.msra.mxu0 0.0
    %277 = vmatprep.subr.mxu0 0.0
    %278 = vmatpush1.msra.mxu0 0.0
    %279 = vmatprep.subr.mxu0 0.0
    %280 = vmatpush1.msra.mxu0 0.0
    %281 = vmatprep.subr.mxu0 0.0
    %282 = vmatpush1.msra.mxu0 0.0
    %283 = vmatprep.subr.mxu0 0.0
    %284 = vmatpush1.msra.mxu0 0.0
    %285 = vmatprep.subr.mxu0 0.0
    %286 = vmatpush1.msra.mxu0 0.0
    %287 = vmatprep.subr.mxu0 0.0
    %288 = vmatpush1.msra.mxu0 0.0
    %289 = vmatprep.subr.mxu0 0.0
    %290 = vmatpush1.msra.mxu0 0.0
    %291 = vmatprep.subr.mxu0 0.0
    %292 = vmatpush1.msra.mxu0 0.0
    %293 = vmatprep.subr.mxu0 0.0
    %294 = vmatpush1.msra.mxu0 0.0
    %295 = vmatprep.subr.mxu0 0.0
    %296 = vmatpush1.msra.mxu0 0.0
    %297 = vmatprep.subr.mxu0 0.0
    %298 = vmatpush1.msra.mxu0 0.0
    %299 = vmatprep.subr.mxu0 0.0
    %300 = vmatpush1.msra.mxu0 0.0
    %301 = vmatprep.subr.mxu0 0.0
    %302 = vmatpush1.msra.mxu0 0.0
    %303 = vmatprep.subr.mxu0 0.0
    %304 = vmatpush1.msra.mxu0 0.0
    %305 = vmatprep.subr.mxu0 0.0
    %306 = vmatpush1.msra.mxu0 0.0
    %307 = vmatprep.subr.mxu0 0.0
    %308 = vmatpush1.msra.mxu0 0.0
    %309 = vmatprep.subr.mxu0 0.0
    %310 = vmatpush1.msra.mxu0 0.0
    %311 = vmatprep.subr.mxu0 0.0
    %312 = vmatpush1.msra.mxu0 0.0
    %313 = vmatprep.subr.mxu0 0.0
    %314 = vmatpush1.msra.mxu0 0.0
    %315 = vmatprep.subr.mxu0 0.0
    %316 = vmatpush1.msra.mxu0 0.0
    %317 = vmatprep.subr.mxu0 0.0
    %318 = vmatpush1.msra.mxu0 0.0
    %319 = vmatprep.subr.mxu0 0.0
    %320 = vmatpush1.msra.mxu0 0.0
    %321 = vmatprep.subr.mxu0 0.0
    %322 = vmatpush1.msra.mxu0 0.0
    %323 = vmatprep.subr.mxu0 0.0
    %324 = vmatpush1.msra.mxu0 0.0
    %325 = vmatprep.mubr.f32.mxu0 0.0
    %326 = vmatmul.mubr.f32.gmra.mrb[0].mxu0 %v259
    %v327 = vpop.f32.mrb[0].mxu0
    %v328 = vadd.f32 0.0, %v327
    %v329 = vpop.f32.mrb[0].mxu0
    %330 = vdwg.mxu0
    %v332 = vrot.slane %v328, 1
    %v335 = vadd.f32 %v226, %v328
    %v336 = vadd.f32 %v231, %v332
    %v337 = vtanh.pop %v335
    %v338 = vtanh.pop %v336
    %v339 = vxor.u32 %v335, 2147483648
    %v340 = vxor.u32 %v336, 2147483648
    %v341 = vmul.f32 %v339, 1.442695
    %v342 = vpow.pop %v341
    %v343 = vmul.f32 %v340, 1.442695
    %v344 = vpow.pop %v343
    %v345 = vadd.f32 %v342, 1.0
    %v346 = vadd.f32 %v344, 1.0
    %v347 = vrcp.pop %v345
    %v348 = vmul.f32 1.0, %v347
    %v349 = vrcp.pop %v346
    %v350 = vmul.f32 1.0, %v349
    %v353 = vrot.slane %v338, 7
    %vm354 = vcmask 1041409
    %v355 = vsel %vm354, %v353, %v337
    %v359 = vrot.slane %v350, 7
    %v360 = vsel %vm354, %v359, %v348
    %v362 = vsel %vm256, %v355, %v360
    %v363 = vmul.f32 %v362, 0.0
    %365 = vrot.lane.b32.xlu0 %v362, 64
    %v366 = vpop.permute.xlu0 %365
    %v368 = vmul.f32 %v362, %v366
    %370 = vrot.lane.b32.xlu0 %v368, 32
    %v371 = vpop.permute.xlu0 %370
    %v373 = vadd.f32 %v363, %v371
    %v374 = vtanh.pop %v373
    %376 = vrot.lane.b32.xlu0 %v374, 64
    %v377 = vpop.permute.xlu0 %376
    %v379 = vmul.f32 %v362, %v377
    %381 = vrot.lane.b32.xlu0 %v379, 32
    %v382 = vpop.permute.xlu0 %381
    %v383 = vsel %vm257, %v382, 0
    %385 = vmatprep.subr.mxu0 0.0
    %386 = vmatpush1.msra.mxu0 %v244
    %387 = vmatprep.subr.mxu0 0.0
    %388 = vmatpush1.msra.mxu0 %v245
    %389 = vmatprep.subr.mxu0 0.0
    %390 = vmatpush1.msra.mxu0 %v246
    %391 = vmatprep.subr.mxu0 0.0
    %392 = vmatpush1.msra.mxu0 %v247
    %393 = vmatprep.subr.mxu0 0.0
    %394 = vmatpush1.msra.mxu0 0.0
    %395 = vmatprep.subr.mxu0 0.0
    %396 = vmatpush1.msra.mxu0 0.0
    %397 = vmatprep.subr.mxu0 0.0
    %398 = vmatpush1.msra.mxu0 0.0
    %399 = vmatprep.subr.mxu0 0.0
    %400 = vmatpush1.msra.mxu0 0.0
    %401 = vmatprep.subr.mxu0 0.0
    %402 = vmatpush1.msra.mxu0 0.0
    %403 = vmatprep.subr.mxu0 0.0
    %404 = vmatpush1.msra.mxu0 0.0
    %405 = vmatprep.subr.mxu0 0.0
    %406 = vmatpush1.msra.mxu0 0.0
    %407 = vmatprep.subr.mxu0 0.0
    %408 = vmatpush1.msra.mxu0 0.0
    %409 = vmatprep.subr.mxu0 0.0
    %410 = vmatpush1.msra.mxu0 0.0
    %411 = vmatprep.subr.mxu0 0.0
    %412 = vmatpush1.msra.mxu0 0.0
    %413 = vmatprep.subr.mxu0 0.0
    %414 = vmatpush1.msra.mxu0 0.0
    %415 = vmatprep.subr.mxu0 0.0
    %416 = vmatpush1.msra.mxu0 0.0
    %417 = vmatprep.subr.mxu0 0.0
    %418 = vmatpush1.msra.mxu0 0.0
    %419 = vmatprep.subr.mxu0 0.0
    %420 = vmatpush1.msra.mxu0 0.0
    %421 = vmatprep.subr.mxu0 0.0
    %422 = vmatpush1.msra.mxu0 0.0
    %423 = vmatprep.subr.mxu0 0.0
    %424 = vmatpush1.msra.mxu0 0.0
    %425 = vmatprep.subr.mxu0 0.0
    %426 = vmatpush1.msra.mxu0 0.0
    %427 = vmatprep.subr.mxu0 0.0
    %428 = vmatpush1.msra.mxu0 0.0
    %429 = vmatprep.subr.mxu0 0.0
    %430 = vmatpush1.msra.mxu0 0.0
    %431 = vmatprep.subr.mxu0 0.0
    %432 = vmatpush1.msra.mxu0 0.0
    %433 = vmatprep.subr.mxu0 0.0
    %434 = vmatpush1.msra.mxu0 0.0
    %435 = vmatprep.subr.mxu0 0.0
    %436 = vmatpush1.msra.mxu0 0.0
    %437 = vmatprep.subr.mxu0 0.0
    %438 = vmatpush1.msra.mxu0 0.0
    %439 = vmatprep.subr.mxu0 0.0
    %440 = vmatpush1.msra.mxu0 0.0
    %441 = vmatprep.subr.mxu0 0.0
    %442 = vmatpush1.msra.mxu0 0.0
    %443 = vmatprep.subr.mxu0 0.0
    %444 = vmatpush1.msra.mxu0 0.0
    %445 = vmatprep.subr.mxu0 0.0
    %446 = vmatpush1.msra.mxu0 0.0
    %447 = vmatprep.subr.mxu0 0.0
    %448 = vmatpush1.msra.mxu0 0.0
    %449 = vmatprep.mubr.f32.mxu0 0.0
    %450 = vmatmul.mubr.f32.gmra.mrb[0].mxu0 %v383
    %v451 = vpop.f32.mrb[0].mxu0
    %v452 = vadd.f32 0.0, %v451
    %v453 = vpop.f32.mrb[0].mxu0
    %454 = vdwg.mxu0
    %v456 = vrot.slane %v452, 7
    %v459 = vadd.f32 %v226, %v456
    %v460 = vadd.f32 %v231, %v452
    %v461 = vtanh.pop %v459
    %v462 = vtanh.pop %v460
    %v463 = vxor.u32 %v459, 2147483648
    %v464 = vxor.u32 %v460, 2147483648
    %v465 = vmul.f32 %v463, 1.442695
    %v466 = vpow.pop %v465
    %v467 = vmul.f32 %v464, 1.442695
    %v468 = vpow.pop %v467
    %v469 = vadd.f32 %v466, 1.0
    %v470 = vadd.f32 %v468, 1.0
    %v471 = vrcp.pop %v469
    %v472 = vmul.f32 1.0, %v471
    %v473 = vrcp.pop %v470
    %v474 = vmul.f32 1.0, %v473
    %v477 = vrot.slane %v461, 1
    %v478 = vsel %vm354, %v462, %v477
    %v482 = vrot.slane %v472, 1
    %v483 = vsel %vm354, %v474, %v482
    %v485 = vsel %vm256, %v478, %v483
    %v486 = vmul.f32 %v485, %v373
    %488 = vrot.lane.b32.xlu0 %v485, 64
    %v489 = vpop.permute.xlu0 %488
    %v491 = vmul.f32 %v485, %v489
    %493 = vrot.lane.b32.xlu0 %v491, 32
    %v494 = vpop.permute.xlu0 %493
    %v496 = vadd.f32 %v486, %v494
    %v497 = vtanh.pop %v496
    %499 = vrot.lane.b32.xlu0 %v497, 64
    %v500 = vpop.permute.xlu0 %499
    %v502 = vmul.f32 %v485, %v500
    %504 = vrot.lane.b32.xlu0 %v502, 32
    %v505 = vpop.permute.xlu0 %504
    %v506 = vsel %vm257, %v505, 0
    %508 = vmatprep.subr.mxu0 0.0
    %509 = vmatpush1.msra.mxu0 %v244
    %510 = vmatprep.subr.mxu0 0.0
    %511 = vmatpush1.msra.mxu0 %v245
    %512 = vmatprep.subr.mxu0 0.0
    %513 = vmatpush1.msra.mxu0 %v246
    %514 = vmatprep.subr.mxu0 0.0
    %515 = vmatpush1.msra.mxu0 %v247
    %516 = vmatprep.subr.mxu0 0.0
    %517 = vmatpush1.msra.mxu0 0.0
    %518 = vmatprep.subr.mxu0 0.0
    %519 = vmatpush1.msra.mxu0 0.0
    %520 = vmatprep.subr.mxu0 0.0
    %521 = vmatpush1.msra.mxu0 0.0
    %522 = vmatprep.subr.mxu0 0.0
    %523 = vmatpush1.msra.mxu0 0.0
    %524 = vmatprep.subr.mxu0 0.0
    %525 = vmatpush1.msra.mxu0 0.0
    %526 = vmatprep.subr.mxu0 0.0
    %527 = vmatpush1.msra.mxu0 0.0
    %528 = vmatprep.subr.mxu0 0.0
    %529 = vmatpush1.msra.mxu0 0.0
    %530 = vmatprep.subr.mxu0 0.0
    %531 = vmatpush1.msra.mxu0 0.0
    %532 = vmatprep.subr.mxu0 0.0
    %533 = vmatpush1.msra.mxu0 0.0
    %534 = vmatprep.subr.mxu0 0.0
    %535 = vmatpush1.msra.mxu0 0.0
    %536 = vmatprep.subr.mxu0 0.0
    %537 = vmatpush1.msra.mxu0 0.0
    %538 = vmatprep.subr.mxu0 0.0
    %539 = vmatpush1.msra.mxu0 0.0
    %540 = vmatprep.subr.mxu0 0.0
    %541 = vmatpush1.msra.mxu0 0.0
    %542 = vmatprep.subr.mxu0 0.0
    %543 = vmatpush1.msra.mxu0 0.0
    %544 = vmatprep.subr.mxu0 0.0
    %545 = vmatpush1.msra.mxu0 0.0
    %546 = vmatprep.subr.mxu0 0.0
    %547 = vmatpush1.msra.mxu0 0.0
    %548 = vmatprep.subr.mxu0 0.0
    %549 = vmatpush1.msra.mxu0 0.0
    %550 = vmatprep.subr.mxu0 0.0
    %551 = vmatpush1.msra.mxu0 0.0
    %552 = vmatprep.subr.mxu0 0.0
    %553 = vmatpush1.msra.mxu0 0.0
    %554 = vmatprep.subr.mxu0 0.0
    %555 = vmatpush1.msra.mxu0 0.0
    %556 = vmatprep.subr.mxu0 0.0
    %557 = vmatpush1.msra.mxu0 0.0
    %558 = vmatprep.subr.mxu0 0.0
    %559 = vmatpush1.msra.mxu0 0.0
    %560 = vmatprep.subr.mxu0 0.0
    %561 = vmatpush1.msra.mxu0 0.0
    %562 = vmatprep.subr.mxu0 0.0
    %563 = vmatpush1.msra.mxu0 0.0
    %564 = vmatprep.subr.mxu0 0.0
    %565 = vmatpush1.msra.mxu0 0.0
    %566 = vmatprep.subr.mxu0 0.0
    %567 = vmatpush1.msra.mxu0 0.0
    %568 = vmatprep.subr.mxu0 0.0
    %569 = vmatpush1.msra.mxu0 0.0
    %570 = vmatprep.subr.mxu0 0.0
    %571 = vmatpush1.msra.mxu0 0.0
    %572 = vmatprep.mubr.f32.mxu0 0.0
    %573 = vmatmul.mubr.f32.gmra.mrb[0].mxu0 %v506
    %v574 = vpop.f32.mrb[0].mxu0
    %v575 = vadd.f32 0.0, %v574
    %v576 = vpop.f32.mrb[0].mxu0
    %577 = vdwg.mxu0
    %v579 = vrot.slane %v575, 6
    %v580 = vrot.slane %v575, 7
    %v583 = vadd.f32 %v226, %v579
    %v584 = vadd.f32 %v231, %v580
    %v585 = vtanh.pop %v583
    %v586 = vtanh.pop %v584
    %v587 = vxor.u32 %v583, 2147483648
    %v588 = vxor.u32 %v584, 2147483648
    %v589 = vmul.f32 %v587, 1.442695
    %v590 = vpow.pop %v589
    %v591 = vmul.f32 %v588, 1.442695
    %v592 = vpow.pop %v591
    %v593 = vadd.f32 %v590, 1.0
    %v594 = vadd.f32 %v592, 1.0
    %v595 = vrcp.pop %v593
    %v596 = vmul.f32 1.0, %v595
    %v597 = vrcp.pop %v594
    %v598 = vmul.f32 1.0, %v597
    %v601 = vrot.slane %v585, 2
    %v602 = vrot.slane %v586, 1
    %v603 = vsel %vm354, %v602, %v601
    %v607 = vrot.slane %v596, 2
    %v608 = vrot.slane %v598, 1
    %v609 = vsel %vm354, %v608, %v607
    %v611 = vsel %vm256, %v603, %v609
    %v612 = vmul.f32 %v611, %v496
    %614 = vrot.lane.b32.xlu0 %v611, 64
    %v615 = vpop.permute.xlu0 %614
    %v617 = vmul.f32 %v611, %v615
    %619 = vrot.lane.b32.xlu0 %v617, 32
    %v620 = vpop.permute.xlu0 %619
    %v622 = vadd.f32 %v612, %v620
    %v623 = vtanh.pop %v622
    %625 = vrot.lane.b32.xlu0 %v623, 64
    %v626 = vpop.permute.xlu0 %625
    %v628 = vmul.f32 %v611, %v626
    %630 = vrot.lane.b32.xlu0 %v628, 32
    %v631 = vpop.permute.xlu0 %630
    %v632 = vsel %vm257, %v631, 0
    %634 = vmatprep.subr.mxu0 0.0
    %635 = vmatpush1.msra.mxu0 %v244
    %636 = vmatprep.subr.mxu0 0.0
    %637 = vmatpush1.msra.mxu0 %v245
    %638 = vmatprep.subr.mxu0 0.0
    %639 = vmatpush1.msra.mxu0 %v246
    %640 = vmatprep.subr.mxu0 0.0
    %641 = vmatpush1.msra.mxu0 %v247
    %642 = vmatprep.subr.mxu0 0.0
    %643 = vmatpush1.msra.mxu0 0.0
    %644 = vmatprep.subr.mxu0 0.0
    %645 = vmatpush1.msra.mxu0 0.0
    %646 = vmatprep.subr.mxu0 0.0
    %647 = vmatpush1.msra.mxu0 0.0
    %648 = vmatprep.subr.mxu0 0.0
    %649 = vmatpush1.msra.mxu0 0.0
    %650 = vmatprep.subr.mxu0 0.0
    %651 = vmatpush1.msra.mxu0 0.0
    %652 = vmatprep.subr.mxu0 0.0
    %653 = vmatpush1.msra.mxu0 0.0
    %654 = vmatprep.subr.mxu0 0.0
    %655 = vmatpush1.msra.mxu0 0.0
    %656 = vmatprep.subr.mxu0 0.0
    %657 = vmatpush1.msra.mxu0 0.0
    %658 = vmatprep.subr.mxu0 0.0
    %659 = vmatpush1.msra.mxu0 0.0
    %660 = vmatprep.subr.mxu0 0.0
    %661 = vmatpush1.msra.mxu0 0.0
    %662 = vmatprep.subr.mxu0 0.0
    %663 = vmatpush1.msra.mxu0 0.0
    %664 = vmatprep.subr.mxu0 0.0
    %665 = vmatpush1.msra.mxu0 0.0
    %666 = vmatprep.subr.mxu0 0.0
    %667 = vmatpush1.msra.mxu0 0.0
    %668 = vmatprep.subr.mxu0 0.0
    %669 = vmatpush1.msra.mxu0 0.0
    %670 = vmatprep.subr.mxu0 0.0
    %671 = vmatpush1.msra.mxu0 0.0
    %672 = vmatprep.subr.mxu0 0.0
    %673 = vmatpush1.msra.mxu0 0.0
    %674 = vmatprep.subr.mxu0 0.0
    %675 = vmatpush1.msra.mxu0 0.0
    %676 = vmatprep.subr.mxu0 0.0
    %677 = vmatpush1.msra.mxu0 0.0
    %678 = vmatprep.subr.mxu0 0.0
    %679 = vmatpush1.msra.mxu0 0.0
    %680 = vmatprep.subr.mxu0 0.0
    %681 = vmatpush1.msra.mxu0 0.0
    %682 = vmatprep.subr.mxu0 0.0
    %683 = vmatpush1.msra.mxu0 0.0
    %684 = vmatprep.subr.mxu0 0.0
    %685 = vmatpush1.msra.mxu0 0.0
    %686 = vmatprep.subr.mxu0 0.0
    %687 = vmatpush1.msra.mxu0 0.0
    %688 = vmatprep.subr.mxu0 0.0
    %689 = vmatpush1.msra.mxu0 0.0
    %690 = vmatprep.subr.mxu0 0.0
    %691 = vmatpush1.msra.mxu0 0.0
    %692 = vmatprep.subr.mxu0 0.0
    %693 = vmatpush1.msra.mxu0 0.0
    %694 = vmatprep.subr.mxu0 0.0
    %695 = vmatpush1.msra.mxu0 0.0
    %696 = vmatprep.subr.mxu0 0.0
    %697 = vmatpush1.msra.mxu0 0.0
    %698 = vmatprep.mubr.f32.mxu0 0.0
    %699 = vmatmul.mubr.f32.gmra.mrb[0].mxu0 %v632
    %v700 = vpop.f32.mrb[0].mxu0
    %v701 = vadd.f32 0.0, %v700
    %v702 = vpop.f32.mrb[0].mxu0
    %703 = vdwg.mxu0
    %v705 = vrot.slane %v701, 5
    %v706 = vrot.slane %v701, 6
    %v709 = vadd.f32 %v226, %v705
    %v710 = vadd.f32 %v231, %v706
    %v711 = vtanh.pop %v709
    %v712 = vtanh.pop %v710
    %v713 = vxor.u32 %v709, 2147483648
    %v714 = vxor.u32 %v710, 2147483648
    %v715 = vmul.f32 %v713, 1.442695
    %v716 = vpow.pop %v715
    %v717 = vmul.f32 %v714, 1.442695
    %v718 = vpow.pop %v717
    %v719 = vadd.f32 %v716, 1.0
    %v720 = vadd.f32 %v718, 1.0
    %v721 = vrcp.pop %v719
    %v722 = vmul.f32 1.0, %v721
    %v723 = vrcp.pop %v720
    %v724 = vmul.f32 1.0, %v723
    %v727 = vrot.slane %v711, 3
    %v728 = vrot.slane %v712, 2
    %v729 = vsel %vm354, %v728, %v727
    %v733 = vrot.slane %v722, 3
    %v734 = vrot.slane %v724, 2
    %v735 = vsel %vm354, %v734, %v733
    %v737 = vsel %vm256, %v729, %v735
    %v738 = vmul.f32 %v737, %v622
    %740 = vrot.lane.b32.xlu0 %v737, 64
    %v741 = vpop.permute.xlu0 %740
    %v743 = vmul.f32 %v737, %v741
    %745 = vrot.lane.b32.xlu0 %v743, 32
    %v746 = vpop.permute.xlu0 %745
    %v748 = vadd.f32 %v738, %v746
    %v749 = vtanh.pop %v748
    %751 = vrot.lane.b32.xlu0 %v749, 64
    %v752 = vpop.permute.xlu0 %751
    %v754 = vmul.f32 %v737, %v752
    %756 = vrot.lane.b32.xlu0 %v754, 32
    %v757 = vpop.permute.xlu0 %756
    %v758 = vsel %vm257, %v757, 0
    %760 = vmatprep.subr.mxu0 0.0
    %761 = vmatpush1.msra.mxu0 %v244
    %762 = vmatprep.subr.mxu0 0.0
    %763 = vmatpush1.msra.mxu0 %v245
    %764 = vmatprep.subr.mxu0 0.0
    %765 = vmatpush1.msra.mxu0 %v246
    %766 = vmatprep.subr.mxu0 0.0
    %767 = vmatpush1.msra.mxu0 %v247
    %768 = vmatprep.subr.mxu0 0.0
    %769 = vmatpush1.msra.mxu0 0.0
    %770 = vmatprep.subr.mxu0 0.0
    %771 = vmatpush1.msra.mxu0 0.0
    %772 = vmatprep.subr.mxu0 0.0
    %773 = vmatpush1.msra.mxu0 0.0
    %774 = vmatprep.subr.mxu0 0.0
    %775 = vmatpush1.msra.mxu0 0.0
    %776 = vmatprep.subr.mxu0 0.0
    %777 = vmatpush1.msra.mxu0 0.0
    %778 = vmatprep.subr.mxu0 0.0
    %779 = vmatpush1.msra.mxu0 0.0
    %780 = vmatprep.subr.mxu0 0.0
    %781 = vmatpush1.msra.mxu0 0.0
    %782 = vmatprep.subr.mxu0 0.0
    %783 = vmatpush1.msra.mxu0 0.0
    %784 = vmatprep.subr.mxu0 0.0
    %785 = vmatpush1.msra.mxu0 0.0
    %786 = vmatprep.subr.mxu0 0.0
    %787 = vmatpush1.msra.mxu0 0.0
    %788 = vmatprep.subr.mxu0 0.0
    %789 = vmatpush1.msra.mxu0 0.0
    %790 = vmatprep.subr.mxu0 0.0
    %791 = vmatpush1.msra.mxu0 0.0
    %792 = vmatprep.subr.mxu0 0.0
    %793 = vmatpush1.msra.mxu0 0.0
    %794 = vmatprep.subr.mxu0 0.0
    %795 = vmatpush1.msra.mxu0 0.0
    %796 = vmatprep.subr.mxu0 0.0
    %797 = vmatpush1.msra.mxu0 0.0
    %798 = vmatprep.subr.mxu0 0.0
    %799 = vmatpush1.msra.mxu0 0.0
    %800 = vmatprep.subr.mxu0 0.0
    %801 = vmatpush1.msra.mxu0 0.0
    %802 = vmatprep.subr.mxu0 0.0
    %803 = vmatpush1.msra.mxu0 0.0
    %804 = vmatprep.subr.mxu0 0.0
    %805 = vmatpush1.msra.mxu0 0.0
    %806 = vmatprep.subr.mxu0 0.0
    %807 = vmatpush1.msra.mxu0 0.0
    %808 = vmatprep.subr.mxu0 0.0
    %809 = vmatpush1.msra.mxu0 0.0
    %810 = vmatprep.subr.mxu0 0.0
    %811 = vmatpush1.msra.mxu0 0.0
    %812 = vmatprep.subr.mxu0 0.0
    %813 = vmatpush1.msra.mxu0 0.0
    %814 = vmatprep.subr.mxu0 0.0
    %815 = vmatpush1.msra.mxu0 0.0
    %816 = vmatprep.subr.mxu0 0.0
    %817 = vmatpush1.msra.mxu0 0.0
    %818 = vmatprep.subr.mxu0 0.0
    %819 = vmatpush1.msra.mxu0 0.0
    %820 = vmatprep.subr.mxu0 0.0
    %821 = vmatpush1.msra.mxu0 0.0
    %822 = vmatprep.subr.mxu0 0.0
    %823 = vmatpush1.msra.mxu0 0.0
    %824 = vmatprep.mubr.f32.mxu0 0.0
    %825 = vmatmul.mubr.f32.gmra.mrb[0].mxu0 %v758
    %v826 = vpop.f32.mrb[0].mxu0
    %v827 = vadd.f32 0.0, %v826
    %v828 = vpop.f32.mrb[0].mxu0
    %829 = vdwg.mxu0
    %v831 = vrot.slane %v827, 4
    %v832 = vrot.slane %v827, 5
    %v835 = vadd.f32 %v226, %v831
    %v836 = vadd.f32 %v231, %v832
    %v837 = vtanh.pop %v835
    %v838 = vtanh.pop %v836
    %v839 = vxor.u32 %v835, 2147483648
    %v840 = vxor.u32 %v836, 2147483648
    %v841 = vmul.f32 %v839, 1.442695
    %v842 = vpow.pop %v841
    %v843 = vmul.f32 %v840, 1.442695
    %v844 = vpow.pop %v843
    %v845 = vadd.f32 %v842, 1.0
    %v846 = vadd.f32 %v844, 1.0
    %v847 = vrcp.pop %v845
    %v848 = vmul.f32 1.0, %v847
    %v849 = vrcp.pop %v846
    %v850 = vmul.f32 1.0, %v849
    %v853 = vrot.slane %v837, 4
    %v854 = vrot.slane %v838, 3
    %v855 = vsel %vm354, %v854, %v853
    %v859 = vrot.slane %v848, 4
    %v860 = vrot.slane %v850, 3
    %v861 = vsel %vm354, %v860, %v859
    %v863 = vsel %vm256, %v855, %v861
    %v864 = vmul.f32 %v863, %v748
    %866 = vrot.lane.b32.xlu0 %v863, 64
    %v867 = vpop.permute.xlu0 %866
    %v869 = vmul.f32 %v863, %v867
    %871 = vrot.lane.b32.xlu0 %v869, 32
    %v872 = vpop.permute.xlu0 %871
    %v874 = vadd.f32 %v864, %v872
    %v875 = vtanh.pop %v874
    %877 = vrot.lane.b32.xlu0 %v875, 64
    %v878 = vpop.permute.xlu0 %877
    %v880 = vmul.f32 %v863, %v878
    %882 = vrot.lane.b32.xlu0 %v880, 32
    %v883 = vpop.permute.xlu0 %882
    %v884 = vsel %vm257, %v883, 0
    %886 = vmatprep.subr.mxu0 0.0
    %887 = vmatpush1.msra.mxu0 %v244
    %888 = vmatprep.subr.mxu0 0.0
    %889 = vmatpush1.msra.mxu0 %v245
    %890 = vmatprep.subr.mxu0 0.0
    %891 = vmatpush1.msra.mxu0 %v246
    %892 = vmatprep.subr.mxu0 0.0
    %893 = vmatpush1.msra.mxu0 %v247
    %894 = vmatprep.subr.mxu0 0.0
    %895 = vmatpush1.msra.mxu0 0.0
    %896 = vmatprep.subr.mxu0 0.0
    %897 = vmatpush1.msra.mxu0 0.0
    %898 = vmatprep.subr.mxu0 0.0
    %899 = vmatpush1.msra.mxu0 0.0
    %900 = vmatprep.subr.mxu0 0.0
    %901 = vmatpush1.msra.mxu0 0.0
    %902 = vmatprep.subr.mxu0 0.0
    %903 = vmatpush1.msra.mxu0 0.0
    %904 = vmatprep.subr.mxu0 0.0
    %905 = vmatpush1.msra.mxu0 0.0
    %906 = vmatprep.subr.mxu0 0.0
    %907 = vmatpush1.msra.mxu0 0.0
    %908 = vmatprep.subr.mxu0 0.0
    %909 = vmatpush1.msra.mxu0 0.0
    %910 = vmatprep.subr.mxu0 0.0
    %911 = vmatpush1.msra.mxu0 0.0
    %912 = vmatprep.subr.mxu0 0.0
    %913 = vmatpush1.msra.mxu0 0.0
    %914 = vmatprep.subr.mxu0 0.0
    %915 = vmatpush1.msra.mxu0 0.0
    %916 = vmatprep.subr.mxu0 0.0
    %917 = vmatpush1.msra.mxu0 0.0
    %918 = vmatprep.subr.mxu0 0.0
    %919 = vmatpush1.msra.mxu0 0.0
    %920 = vmatprep.subr.mxu0 0.0
    %921 = vmatpush1.msra.mxu0 0.0
    %922 = vmatprep.subr.mxu0 0.0
    %923 = vmatpush1.msra.mxu0 0.0
    %924 = vmatprep.subr.mxu0 0.0
    %925 = vmatpush1.msra.mxu0 0.0
    %926 = vmatprep.subr.mxu0 0.0
    %927 = vmatpush1.msra.mxu0 0.0
    %928 = vmatprep.subr.mxu0 0.0
    %929 = vmatpush1.msra.mxu0 0.0
    %930 = vmatprep.subr.mxu0 0.0
    %931 = vmatpush1.msra.mxu0 0.0
    %932 = vmatprep.subr.mxu0 0.0
    %933 = vmatpush1.msra.mxu0 0.0
    %934 = vmatprep.subr.mxu0 0.0
    %935 = vmatpush1.msra.mxu0 0.0
    %936 = vmatprep.subr.mxu0 0.0
    %937 = vmatpush1.msra.mxu0 0.0
    %938 = vmatprep.subr.mxu0 0.0
    %939 = vmatpush1.msra.mxu0 0.0
    %940 = vmatprep.subr.mxu0 0.0
    %941 = vmatpush1.msra.mxu0 0.0
    %942 = vmatprep.subr.mxu0 0.0
    %943 = vmatpush1.msra.mxu0 0.0
    %944 = vmatprep.subr.mxu0 0.0
    %945 = vmatpush1.msra.mxu0 0.0
    %946 = vmatprep.subr.mxu0 0.0
    %947 = vmatpush1.msra.mxu0 0.0
    %948 = vmatprep.subr.mxu0 0.0
    %949 = vmatpush1.msra.mxu0 0.0
    %950 = vmatprep.mubr.f32.mxu0 0.0
    %951 = vmatmul.mubr.f32.gmra.mrb[0].mxu0 %v884
    %v952 = vpop.f32.mrb[0].mxu0
    %v953 = vadd.f32 0.0, %v952
    %v954 = vpop.f32.mrb[0].mxu0
    %955 = vdwg.mxu0
    %v957 = vrot.slane %v953, 3
    %v958 = vrot.slane %v953, 4
    %v961 = vadd.f32 %v226, %v957
    %v962 = vadd.f32 %v231, %v958
    %v963 = vtanh.pop %v961
    %v964 = vtanh.pop %v962
    %v965 = vxor.u32 %v961, 2147483648
    %v966 = vxor.u32 %v962, 2147483648
    %v967 = vmul.f32 %v965, 1.442695
    %v968 = vpow.pop %v967
    %v969 = vmul.f32 %v966, 1.442695
    %v970 = vpow.pop %v969
    %v971 = vadd.f32 %v968, 1.0
    %v972 = vadd.f32 %v970, 1.0
    %v973 = vrcp.pop %v971
    %v974 = vmul.f32 1.0, %v973
    %v975 = vrcp.pop %v972
    %v976 = vmul.f32 1.0, %v975
    %v979 = vrot.slane %v963, 5
    %v980 = vrot.slane %v964, 4
    %v981 = vsel %vm354, %v980, %v979
    %v985 = vrot.slane %v974, 5
    %v986 = vrot.slane %v976, 4
    %v987 = vsel %vm354, %v986, %v985
    %v989 = vsel %vm256, %v981, %v987
    %v990 = vmul.f32 %v989, %v874
    %992 = vrot.lane.b32.xlu0 %v989, 64
    %v993 = vpop.permute.xlu0 %992
    %v995 = vmul.f32 %v989, %v993
    %997 = vrot.lane.b32.xlu0 %v995, 32
    %v998 = vpop.permute.xlu0 %997
    %v1000 = vadd.f32 %v990, %v998
    %v1001 = vtanh.pop %v1000
    %1003 = vrot.lane.b32.xlu0 %v1001, 64
    %v1004 = vpop.permute.xlu0 %1003
    %v1006 = vmul.f32 %v989, %v1004
    %1008 = vrot.lane.b32.xlu0 %v1006, 32
    %v1009 = vpop.permute.xlu0 %1008
    %v1010 = vsel %vm257, %v1009, 0
    %1012 = vmatprep.subr.mxu0 0.0
    %1013 = vmatpush1.msra.mxu0 %v244
    %1014 = vmatprep.subr.mxu0 0.0
    %1015 = vmatpush1.msra.mxu0 %v245
    %1016 = vmatprep.subr.mxu0 0.0
    %1017 = vmatpush1.msra.mxu0 %v246
    %1018 = vmatprep.subr.mxu0 0.0
    %1019 = vmatpush1.msra.mxu0 %v247
    %1020 = vmatprep.subr.mxu0 0.0
    %1021 = vmatpush1.msra.mxu0 0.0
    %1022 = vmatprep.subr.mxu0 0.0
    %1023 = vmatpush1.msra.mxu0 0.0
    %1024 = vmatprep.subr.mxu0 0.0
    %1025 = vmatpush1.msra.mxu0 0.0
    %1026 = vmatprep.subr.mxu0 0.0
    %1027 = vmatpush1.msra.mxu0 0.0
    %1028 = vmatprep.subr.mxu0 0.0
    %1029 = vmatpush1.msra.mxu0 0.0
    %1030 = vmatprep.subr.mxu0 0.0
    %1031 = vmatpush1.msra.mxu0 0.0
    %1032 = vmatprep.subr.mxu0 0.0
    %1033 = vmatpush1.msra.mxu0 0.0
    %1034 = vmatprep.subr.mxu0 0.0
    %1035 = vmatpush1.msra.mxu0 0.0
    %1036 = vmatprep.subr.mxu0 0.0
    %1037 = vmatpush1.msra.mxu0 0.0
    %1038 = vmatprep.subr.mxu0 0.0
    %1039 = vmatpush1.msra.mxu0 0.0
    %1040 = vmatprep.subr.mxu0 0.0
    %1041 = vmatpush1.msra.mxu0 0.0
    %1042 = vmatprep.subr.mxu0 0.0
    %1043 = vmatpush1.msra.mxu0 0.0
    %1044 = vmatprep.subr.mxu0 0.0
    %1045 = vmatpush1.msra.mxu0 0.0
    %1046 = vmatprep.subr.mxu0 0.0
    %1047 = vmatpush1.msra.mxu0 0.0
    %1048 = vmatprep.subr.mxu0 0.0
    %1049 = vmatpush1.msra.mxu0 0.0
    %1050 = vmatprep.subr.mxu0 0.0
    %1051 = vmatpush1.msra.mxu0 0.0
    %1052 = vmatprep.subr.mxu0 0.0
    %1053 = vmatpush1.msra.mxu0 0.0
    %1054 = vmatprep.subr.mxu0 0.0
    %1055 = vmatpush1.msra.mxu0 0.0
    %1056 = vmatprep.subr.mxu0 0.0
    %1057 = vmatpush1.msra.mxu0 0.0
    %1058 = vmatprep.subr.mxu0 0.0
    %1059 = vmatpush1.msra.mxu0 0.0
    %1060 = vmatprep.subr.mxu0 0.0
    %1061 = vmatpush1.msra.mxu0 0.0
    %1062 = vmatprep.subr.mxu0 0.0
    %1063 = vmatpush1.msra.mxu0 0.0
    %1064 = vmatprep.subr.mxu0 0.0
    %1065 = vmatpush1.msra.mxu0 0.0
    %1066 = vmatprep.subr.mxu0 0.0
    %1067 = vmatpush1.msra.mxu0 0.0
    %1068 = vmatprep.subr.mxu0 0.0
    %1069 = vmatpush1.msra.mxu0 0.0
    %1070 = vmatprep.subr.mxu0 0.0
    %1071 = vmatpush1.msra.mxu0 0.0
    %1072 = vmatprep.subr.mxu0 0.0
    %1073 = vmatpush1.msra.mxu0 0.0
    %1074 = vmatprep.subr.mxu0 0.0
    %1075 = vmatpush1.msra.mxu0 0.0
    %1076 = vmatprep.mubr.f32.mxu0 0.0
    %1077 = vmatmul.mubr.f32.gmra.mrb[0].mxu0 %v1010
    %v1078 = vpop.f32.mrb[0].mxu0
    %v1079 = vadd.f32 0.0, %v1078
    %v1080 = vpop.f32.mrb[0].mxu0
    %1081 = vdwg.mxu0
    %v1083 = vrot.slane %v1079, 2
    %v1084 = vrot.slane %v1079, 3
    %v1087 = vadd.f32 %v226, %v1083
    %v1088 = vadd.f32 %v231, %v1084
    %v1089 = vtanh.pop %v1087
    %v1090 = vtanh.pop %v1088
    %v1091 = vxor.u32 %v1087, 2147483648
    %v1092 = vxor.u32 %v1088, 2147483648
    %v1093 = vmul.f32 %v1091, 1.442695
    %v1094 = vpow.pop %v1093
    %v1095 = vmul.f32 %v1092, 1.442695
    %v1096 = vpow.pop %v1095
    %v1097 = vadd.f32 %v1094, 1.0
    %v1098 = vadd.f32 %v1096, 1.0
    %v1099 = vrcp.pop %v1097
    %v1100 = vmul.f32 1.0, %v1099
    %v1101 = vrcp.pop %v1098
    %v1102 = vmul.f32 1.0, %v1101
    %v1105 = vrot.slane %v1089, 6
    %v1106 = vrot.slane %v1090, 5
    %v1107 = vsel %vm354, %v1106, %v1105
    %v1111 = vrot.slane %v1100, 6
    %v1112 = vrot.slane %v1102, 5
    %v1113 = vsel %vm354, %v1112, %v1111
    %v1115 = vsel %vm256, %v1107, %v1113
    %v1116 = vmul.f32 %v1115, %v1000
    %1118 = vrot.lane.b32.xlu0 %v1115, 64
    %v1119 = vpop.permute.xlu0 %1118
    %v1121 = vmul.f32 %v1115, %v1119
    %1123 = vrot.lane.b32.xlu0 %v1121, 32
    %v1124 = vpop.permute.xlu0 %1123
    %v1126 = vadd.f32 %v1116, %v1124
    %v1127 = vtanh.pop %v1126
    %1129 = vrot.lane.b32.xlu0 %v1127, 64
    %v1130 = vpop.permute.xlu0 %1129
    %v1132 = vmul.f32 %v1115, %v1130
    %1134 = vrot.lane.b32.xlu0 %v1132, 32
    %v1135 = vpop.permute.xlu0 %1134
    %v1136 = vsel %vm257, %v1135, 0
    %1138 = vmatprep.subr.mxu0 0.0
    %1139 = vmatpush1.msra.mxu0 %v244
    %1140 = vmatprep.subr.mxu0 0.0
    %1141 = vmatpush1.msra.mxu0 %v245
    %1142 = vmatprep.subr.mxu0 0.0
    %1143 = vmatpush1.msra.mxu0 %v246
    %1144 = vmatprep.subr.mxu0 0.0
    %1145 = vmatpush1.msra.mxu0 %v247
    %1146 = vmatprep.subr.mxu0 0.0
    %1147 = vmatpush1.msra.mxu0 0.0
    %1148 = vmatprep.subr.mxu0 0.0
    %1149 = vmatpush1.msra.mxu0 0.0
    %1150 = vmatprep.subr.mxu0 0.0
    %1151 = vmatpush1.msra.mxu0 0.0
    %1152 = vmatprep.subr.mxu0 0.0
    %1153 = vmatpush1.msra.mxu0 0.0
    %1154 = vmatprep.subr.mxu0 0.0
    %1155 = vmatpush1.msra.mxu0 0.0
    %1156 = vmatprep.subr.mxu0 0.0
    %1157 = vmatpush1.msra.mxu0 0.0
    %1158 = vmatprep.subr.mxu0 0.0
    %1159 = vmatpush1.msra.mxu0 0.0
    %1160 = vmatprep.subr.mxu0 0.0
    %1161 = vmatpush1.msra.mxu0 0.0
    %1162 = vmatprep.subr.mxu0 0.0
    %1163 = vmatpush1.msra.mxu0 0.0
    %1164 = vmatprep.subr.mxu0 0.0
    %1165 = vmatpush1.msra.mxu0 0.0
    %1166 = vmatprep.subr.mxu0 0.0
    %1167 = vmatpush1.msra.mxu0 0.0
    %1168 = vmatprep.subr.mxu0 0.0
    %1169 = vmatpush1.msra.mxu0 0.0
    %1170 = vmatprep.subr.mxu0 0.0
    %1171 = vmatpush1.msra.mxu0 0.0
    %1172 = vmatprep.subr.mxu0 0.0
    %1173 = vmatpush1.msra.mxu0 0.0
    %1174 = vmatprep.subr.mxu0 0.0
    %1175 = vmatpush1.msra.mxu0 0.0
    %1176 = vmatprep.subr.mxu0 0.0
    %1177 = vmatpush1.msra.mxu0 0.0
    %1178 = vmatprep.subr.mxu0 0.0
    %1179 = vmatpush1.msra.mxu0 0.0
    %1180 = vmatprep.subr.mxu0 0.0
    %1181 = vmatpush1.msra.mxu0 0.0
    %1182 = vmatprep.subr.mxu0 0.0
    %1183 = vmatpush1.msra.mxu0 0.0
    %1184 = vmatprep.subr.mxu0 0.0
    %1185 = vmatpush1.msra.mxu0 0.0
    %1186 = vmatprep.subr.mxu0 0.0
    %1187 = vmatpush1.msra.mxu0 0.0
    %1188 = vmatprep.subr.mxu0 0.0
    %1189 = vmatpush1.msra.mxu0 0.0
    %1190 = vmatprep.subr.mxu0 0.0
    %1191 = vmatpush1.msra.mxu0 0.0
    %1192 = vmatprep.subr.mxu0 0.0
    %1193 = vmatpush1.msra.mxu0 0.0
    %1194 = vmatprep.subr.mxu0 0.0
    %1195 = vmatpush1.msra.mxu0 0.0
    %1196 = vmatprep.subr.mxu0 0.0
    %1197 = vmatpush1.msra.mxu0 0.0
    %1198 = vmatprep.subr.mxu0 0.0
    %1199 = vmatpush1.msra.mxu0 0.0
    %1200 = vmatprep.subr.mxu0 0.0
    %1201 = vmatpush1.msra.mxu0 0.0
    %1202 = vmatprep.mubr.f32.mxu0 0.0
    %1203 = vmatmul.mubr.f32.gmra.mrb[0].mxu0 %v1136
    %v1204 = vpop.f32.mrb[0].mxu0
    %v1205 = vadd.f32 0.0, %v1204
    %v1206 = vpop.f32.mrb[0].mxu0
    %1207 = vdwg.mxu0
    %v1209 = vrot.slane %v1205, 1
    %v1210 = vrot.slane %v1205, 2
    %v1213 = vadd.f32 %v226, %v1209
    %v1214 = vadd.f32 %v231, %v1210
    %v1215 = vtanh.pop %v1213
    %v1216 = vtanh.pop %v1214
    %v1217 = vxor.u32 %v1213, 2147483648
    %v1218 = vxor.u32 %v1214, 2147483648
    %v1219 = vmul.f32 %v1217, 1.442695
    %v1220 = vpow.pop %v1219
    %v1221 = vmul.f32 %v1218, 1.442695
    %v1222 = vpow.pop %v1221
    %v1223 = vadd.f32 %v1220, 1.0
    %v1224 = vadd.f32 %v1222, 1.0
    %v1225 = vrcp.pop %v1223
    %v1226 = vmul.f32 1.0, %v1225
    %v1227 = vrcp.pop %v1224
    %v1228 = vmul.f32 1.0, %v1227
    %v1231 = vrot.slane %v1215, 7
    %v1232 = vrot.slane %v1216, 6
    %v1233 = vsel %vm354, %v1232, %v1231
    %v1237 = vrot.slane %v1226, 7
    %v1238 = vrot.slane %v1228, 6
    %v1239 = vsel %vm354, %v1238, %v1237
    %v1241 = vsel %vm256, %v1233, %v1239
    %v1242 = vmul.f32 %v1241, %v1126
    %1244 = vrot.lane.b32.xlu0 %v1241, 64
    %v1245 = vpop.permute.xlu0 %1244
    %v1247 = vmul.f32 %v1241, %v1245
    %1249 = vrot.lane.b32.xlu0 %v1247, 32
    %v1250 = vpop.permute.xlu0 %1249
    %v1252 = vadd.f32 %v1242, %v1250
    %v1253 = vtanh.pop %v1252
    %1255 = vrot.lane.b32.xlu0 %v1253, 64
    %v1256 = vpop.permute.xlu0 %1255
    %v1258 = vmul.f32 %v1241, %v1256
    %1260 = vrot.lane.b32.xlu0 %v1258, 32
    %v1261 = vpop.permute.xlu0 %1260
    %v1262 = vsel %vm257, %v1261, 0
    %1264 = vmatprep.subr.mxu0 0.0
    %1265 = vmatpush1.msra.mxu0 %v248
    %1266 = vmatprep.subr.mxu0 0.0
    %1267 = vmatpush1.msra.mxu0 %v249
    %1268 = vmatprep.subr.mxu0 0.0
    %1269 = vmatpush1.msra.mxu0 %v250
    %1270 = vmatprep.subr.mxu0 0.0
    %1271 = vmatpush1.msra.mxu0 %v251
    %1272 = vmatprep.subr.mxu0 0.0
    %1273 = vmatpush1.msra.mxu0 0.0
    %1274 = vmatprep.subr.mxu0 0.0
    %1275 = vmatpush1.msra.mxu0 0.0
    %1276 = vmatprep.subr.mxu0 0.0
    %1277 = vmatpush1.msra.mxu0 0.0
    %1278 = vmatprep.subr.mxu0 0.0
    %1279 = vmatpush1.msra.mxu0 0.0
    %1280 = vmatprep.subr.mxu0 0.0
    %1281 = vmatpush1.msra.mxu0 0.0
    %1282 = vmatprep.subr.mxu0 0.0
    %1283 = vmatpush1.msra.mxu0 0.0
    %1284 = vmatprep.subr.mxu0 0.0
    %1285 = vmatpush1.msra.mxu0 0.0
    %1286 = vmatprep.subr.mxu0 0.0
    %1287 = vmatpush1.msra.mxu0 0.0
    %1288 = vmatprep.subr.mxu0 0.0
    %1289 = vmatpush1.msra.mxu0 0.0
    %1290 = vmatprep.subr.mxu0 0.0
    %1291 = vmatpush1.msra.mxu0 0.0
    %1292 = vmatprep.subr.mxu0 0.0
    %1293 = vmatpush1.msra.mxu0 0.0
    %1294 = vmatprep.subr.mxu0 0.0
    %1295 = vmatpush1.msra.mxu0 0.0
    %1296 = vmatprep.subr.mxu0 0.0
    %1297 = vmatpush1.msra.mxu0 0.0
    %1298 = vmatprep.subr.mxu0 0.0
    %1299 = vmatpush1.msra.mxu0 0.0
    %1300 = vmatprep.subr.mxu0 0.0
    %1301 = vmatpush1.msra.mxu0 0.0
    %1302 = vmatprep.subr.mxu0 0.0
    %1303 = vmatpush1.msra.mxu0 0.0
    %1304 = vmatprep.subr.mxu0 0.0
    %1305 = vmatpush1.msra.mxu0 0.0
    %1306 = vmatprep.subr.mxu0 0.0
    %1307 = vmatpush1.msra.mxu0 0.0
    %1308 = vmatprep.subr.mxu0 0.0
    %1309 = vmatpush1.msra.mxu0 0.0
    %1310 = vmatprep.subr.mxu0 0.0
    %1311 = vmatpush1.msra.mxu0 0.0
    %1312 = vmatprep.subr.mxu0 0.0
    %1313 = vmatpush1.msra.mxu0 0.0
    %1314 = vmatprep.subr.mxu0 0.0
    %1315 = vmatpush1.msra.mxu0 0.0
    %1316 = vmatprep.subr.mxu0 0.0
    %1317 = vmatpush1.msra.mxu0 0.0
    %1318 = vmatprep.subr.mxu0 0.0
    %1319 = vmatpush1.msra.mxu0 0.0
    %1320 = vmatprep.subr.mxu0 0.0
    %1321 = vmatpush1.msra.mxu0 0.0
    %1322 = vmatprep.subr.mxu0 0.0
    %1323 = vmatpush1.msra.mxu0 0.0
    %1324 = vmatprep.subr.mxu0 0.0
    %1325 = vmatpush1.msra.mxu0 0.0
    %1326 = vmatprep.subr.mxu0 0.0
    %1327 = vmatpush1.msra.mxu0 0.0
    %1328 = vmatprep.mubr.f32.mxu0 0.0
    %1329 = vmatmul.mubr.f32.gmra.mrb[0].mxu0 %v1262
    %v1330 = vpop.f32.mrb[0].mxu0
    %v1331 = vadd.f32 0.0, %v1330
    %v1332 = vpop.f32.mrb[0].mxu0
    %1333 = vdwg.mxu0
    %v1335 = vrot.slane %v1331, 1
    %v1338 = vadd.f32 %v236, %v1331
    %v1339 = vadd.f32 %v241, %v1335
    %v1340 = vtanh.pop %v1338
    %v1341 = vtanh.pop %v1339
    %v1342 = vxor.u32 %v1338, 2147483648
    %v1343 = vxor.u32 %v1339, 2147483648
    %v1344 = vmul.f32 %v1342, 1.442695
    %v1345 = vpow.pop %v1344
    %v1346 = vmul.f32 %v1343, 1.442695
    %v1347 = vpow.pop %v1346
    %v1348 = vadd.f32 %v1345, 1.0
    %v1349 = vadd.f32 %v1347, 1.0
    %v1350 = vrcp.pop %v1348
    %v1351 = vmul.f32 1.0, %v1350
    %v1352 = vrcp.pop %v1349
    %v1353 = vmul.f32 1.0, %v1352
    %v1356 = vrot.slane %v1341, 7
    %v1357 = vsel %vm354, %v1356, %v1340
    %v1361 = vrot.slane %v1353, 7
    %v1362 = vsel %vm354, %v1361, %v1351
    %v1364 = vsel %vm256, %v1357, %v1362
    %v1365 = vmul.f32 %v1364, %v1252
    %1367 = vrot.lane.b32.xlu0 %v1364, 64
    %v1368 = vpop.permute.xlu0 %1367
    %v1370 = vmul.f32 %v1364, %v1368
    %1372 = vrot.lane.b32.xlu0 %v1370, 32
    %v1373 = vpop.permute.xlu0 %1372
    %v1375 = vadd.f32 %v1365, %v1373
    %v1376 = vtanh.pop %v1375
    %1378 = vrot.lane.b32.xlu0 %v1376, 64
    %v1379 = vpop.permute.xlu0 %1378
    %v1381 = vmul.f32 %v1364, %v1379
    %v1384 = vunpack.c.l.s4 1966171168
    %v1385 = vunpack.c.0.s8 %v1384
    %v1386 = vlaneseq
    %v1387 = vshrl.u32 %v1386, 7
    %v1388 = vsub.s32 %v1385, %v1387
    %v1389 = vrot.slane %v1381, %v1388
    %v1390 = vcombine.high %v1389, %v1389
    %v1392 = vunpack.c.l.s4 1966171168
    %v1393 = vunpack.c.0.s8 %v1392
    %v1394 = vlaneseq
    %v1395 = vshrl.u32 %v1394, 7
    %v1396 = vsub.s32 %v1393, %v1395
    %v1397 = vrot.slane %v1389, %v1396
    %v1399 = vunpack.c.l.s4 1966171168
    %v1400 = vunpack.c.0.s8 %v1399
    %v1401 = vlaneseq
    %v1402 = vshrl.u32 %v1401, 7
    %v1403 = vsub.s32 %v1400, %v1402
    %v1404 = vrot.slane %v1390, %v1403
    %v1405 = vlaneseq
    %v1406 = vshrl.u32 %v1405, 7
    %v1407 = vsub.s32 0, %v1406
    %v1408 = vrot.slane %v1397, %v1407
    %v1409 = vlaneseq
    %v1410 = vshrl.u32 %v1409, 7
    %v1411 = vsub.s32 0, %v1410
    %v1412 = vrot.slane %v1404, %v1411
    %1413 = vrot.lane.b32.xlu0 %v1408, 32
    %v1414 = vpop.permute.xlu0 %1413
    %1415 = vrot.lane.b32.xlu0 %v1412, 32
    %v1416 = vpop.permute.xlu0 %1415
    %vm1419 = vcmask 253952
    %1420 = vst.msk [vmem:[#allocation2] sm:$0x1] %vm1419, %v1414
    %1421 = vst.msk [vmem:[#allocation2 + $0x8] sm:$0x1] %vm1419, %v1416
    %1422 = vrot.lane.b32.xlu0 %v1381, 32
    %v1423 = vpop.permute.xlu0 %1422
    %v1424 = vsel %vm257, %v1423, 0
    %1426 = vmatprep.subr.mxu0 0.0
    %1427 = vmatpush1.msra.mxu0 %v248
    %1428 = vmatprep.subr.mxu0 0.0
    %1429 = vmatpush1.msra.mxu0 %v249
    %1430 = vmatprep.subr.mxu0 0.0
    %1431 = vmatpush1.msra.mxu0 %v250
    %1432 = vmatprep.subr.mxu0 0.0
    %1433 = vmatpush1.msra.mxu0 %v251
    %1434 = vmatprep.subr.mxu0 0.0
    %1435 = vmatpush1.msra.mxu0 0.0
    %1436 = vmatprep.subr.mxu0 0.0
    %1437 = vmatpush1.msra.mxu0 0.0
    %1438 = vmatprep.subr.mxu0 0.0
    %1439 = vmatpush1.msra.mxu0 0.0
    %1440 = vmatprep.subr.mxu0 0.0
    %1441 = vmatpush1.msra.mxu0 0.0
    %1442 = vmatprep.subr.mxu0 0.0
    %1443 = vmatpush1.msra.mxu0 0.0
    %1444 = vmatprep.subr.mxu0 0.0
    %1445 = vmatpush1.msra.mxu0 0.0
    %1446 = vmatprep.subr.mxu0 0.0
    %1447 = vmatpush1.msra.mxu0 0.0
    %1448 = vmatprep.subr.mxu0 0.0
    %1449 = vmatpush1.msra.mxu0 0.0
    %1450 = vmatprep.subr.mxu0 0.0
    %1451 = vmatpush1.msra.mxu0 0.0
    %1452 = vmatprep.subr.mxu0 0.0
    %1453 = vmatpush1.msra.mxu0 0.0
    %1454 = vmatprep.subr.mxu0 0.0
    %1455 = vmatpush1.msra.mxu0 0.0
    %1456 = vmatprep.subr.mxu0 0.0
    %1457 = vmatpush1.msra.mxu0 0.0
    %1458 = vmatprep.subr.mxu0 0.0
    %1459 = vmatpush1.msra.mxu0 0.0
    %1460 = vmatprep.subr.mxu0 0.0
    %1461 = vmatpush1.msra.mxu0 0.0
    %1462 = vmatprep.subr.mxu0 0.0
    %1463 = vmatpush1.msra.mxu0 0.0
    %1464 = vmatprep.subr.mxu0 0.0
    %1465 = vmatpush1.msra.mxu0 0.0
    %1466 = vmatprep.subr.mxu0 0.0
    %1467 = vmatpush1.msra.mxu0 0.0
    %1468 = vmatprep.subr.mxu0 0.0
    %1469 = vmatpush1.msra.mxu0 0.0
    %1470 = vmatprep.subr.mxu0 0.0
    %1471 = vmatpush1.msra.mxu0 0.0
    %1472 = vmatprep.subr.mxu0 0.0
    %1473 = vmatpush1.msra.mxu0 0.0
    %1474 = vmatprep.subr.mxu0 0.0
    %1475 = vmatpush1.msra.mxu0 0.0
    %1476 = vmatprep.subr.mxu0 0.0
    %1477 = vmatpush1.msra.mxu0 0.0
    %1478 = vmatprep.subr.mxu0 0.0
    %1479 = vmatpush1.msra.mxu0 0.0
    %1480 = vmatprep.subr.mxu0 0.0
    %1481 = vmatpush1.msra.mxu0 0.0
    %1482 = vmatprep.subr.mxu0 0.0
    %1483 = vmatpush1.msra.mxu0 0.0
    %1484 = vmatprep.subr.mxu0 0.0
    %1485 = vmatpush1.msra.mxu0 0.0
    %1486 = vmatprep.subr.mxu0 0.0
    %1487 = vmatpush1.msra.mxu0 0.0
    %1488 = vmatprep.subr.mxu0 0.0
    %1489 = vmatpush1.msra.mxu0 0.0
    %1490 = vmatprep.mubr.f32.mxu0 0.0
    %1491 = vmatmul.mubr.f32.gmra.mrb[0].mxu0 %v1424
    %v1492 = vpop.f32.mrb[0].mxu0
    %v1493 = vadd.f32 0.0, %v1492
    %v1494 = vpop.f32.mrb[0].mxu0
    %1495 = vdwg.mxu0
    %v1497 = vrot.slane %v1493, 7
    %v1500 = vadd.f32 %v236, %v1497
    %v1501 = vadd.f32 %v241, %v1493
    %v1502 = vtanh.pop %v1500
    %v1503 = vtanh.pop %v1501
    %v1504 = vxor.u32 %v1500, 2147483648
    %v1505 = vxor.u32 %v1501, 2147483648
    %v1506 = vmul.f32 %v1504, 1.442695
    %v1507 = vpow.pop %v1506
    %v1508 = vmul.f32 %v1505, 1.442695
    %v1509 = vpow.pop %v1508
    %v1510 = vadd.f32 %v1507, 1.0
    %v1511 = vadd.f32 %v1509, 1.0
    %v1512 = vrcp.pop %v1510
    %v1513 = vmul.f32 1.0, %v1512
    %v1514 = vrcp.pop %v1511
    %v1515 = vmul.f32 1.0, %v1514
    %v1518 = vrot.slane %v1502, 1
    %v1519 = vsel %vm354, %v1503, %v1518
    %v1523 = vrot.slane %v1513, 1
    %v1524 = vsel %vm354, %v1515, %v1523
    %v1526 = vsel %vm256, %v1519, %v1524
    %v1527 = vmul.f32 %v1526, %v1375
    %1529 = vrot.lane.b32.xlu0 %v1526, 64
    %v1530 = vpop.permute.xlu0 %1529
    %v1532 = vmul.f32 %v1526, %v1530
    %1534 = vrot.lane.b32.xlu0 %v1532, 32
    %v1535 = vpop.permute.xlu0 %1534
    %v1537 = vadd.f32 %v1527, %v1535
    %v1538 = vtanh.pop %v1537
    %1540 = vrot.lane.b32.xlu0 %v1538, 64
    %v1541 = vpop.permute.xlu0 %1540
    %v1543 = vmul.f32 %v1526, %v1541
    %v1546 = vunpack.c.l.s4 1966171168
    %v1547 = vunpack.c.0.s8 %v1546
    %v1548 = vlaneseq
    %v1549 = vshrl.u32 %v1548, 7
    %v1550 = vsub.s32 %v1547, %v1549
    %v1551 = vrot.slane %v1543, %v1550
    %v1552 = vcombine.high %v1551, %v1551
    %v1554 = vunpack.c.l.s4 1966171168
    %v1555 = vunpack.c.0.s8 %v1554
    %v1556 = vlaneseq
    %v1557 = vshrl.u32 %v1556, 7
    %v1558 = vsub.s32 %v1555, %v1557
    %v1559 = vrot.slane %v1551, %v1558
    %v1561 = vunpack.c.l.s4 1966171168
    %v1562 = vunpack.c.0.s8 %v1561
    %v1563 = vlaneseq
    %v1564 = vshrl.u32 %v1563, 7
    %v1565 = vsub.s32 %v1562, %v1564
    %v1566 = vrot.slane %v1552, %v1565
    %v1567 = vlaneseq
    %v1568 = vshrl.u32 %v1567, 7
    %v1569 = vsub.s32 0, %v1568
    %v1570 = vrot.slane %v1559, %v1569
    %v1571 = vlaneseq
    %v1572 = vshrl.u32 %v1571, 7
    %v1573 = vsub.s32 0, %v1572
    %v1574 = vrot.slane %v1566, %v1573
    %1575 = vrot.lane.b32.xlu0 %v1570, 32
    %v1576 = vpop.permute.xlu0 %1575
    %1577 = vrot.lane.b32.xlu0 %v1574, 32
    %v1578 = vpop.permute.xlu0 %1577
    %1581 = vst.msk [vmem:[#allocation2 + $0x1] sm:$0x1] %vm1419, %v1576
    %1582 = vst.msk [vmem:[#allocation2 + $0x9] sm:$0x1] %vm1419, %v1578
    %1583 = vrot.lane.b32.xlu0 %v1543, 32
    %v1584 = vpop.permute.xlu0 %1583
    %v1585 = vsel %vm257, %v1584, 0
    %1587 = vmatprep.subr.mxu0 0.0
    %1588 = vmatpush1.msra.mxu0 %v248
    %1589 = vmatprep.subr.mxu0 0.0
    %1590 = vmatpush1.msra.mxu0 %v249
    %1591 = vmatprep.subr.mxu0 0.0
    %1592 = vmatpush1.msra.mxu0 %v250
    %1593 = vmatprep.subr.mxu0 0.0
    %1594 = vmatpush1.msra.mxu0 %v251
    %1595 = vmatprep.subr.mxu0 0.0
    %1596 = vmatpush1.msra.mxu0 0.0
    %1597 = vmatprep.subr.mxu0 0.0
    %1598 = vmatpush1.msra.mxu0 0.0
    %1599 = vmatprep.subr.mxu0 0.0
    %1600 = vmatpush1.msra.mxu0 0.0
    %1601 = vmatprep.subr.mxu0 0.0
    %1602 = vmatpush1.msra.mxu0 0.0
    %1603 = vmatprep.subr.mxu0 0.0
    %1604 = vmatpush1.msra.mxu0 0.0
    %1605 = vmatprep.subr.mxu0 0.0
    %1606 = vmatpush1.msra.mxu0 0.0
    %1607 = vmatprep.subr.mxu0 0.0
    %1608 = vmatpush1.msra.mxu0 0.0
    %1609 = vmatprep.subr.mxu0 0.0
    %1610 = vmatpush1.msra.mxu0 0.0
    %1611 = vmatprep.subr.mxu0 0.0
    %1612 = vmatpush1.msra.mxu0 0.0
    %1613 = vmatprep.subr.mxu0 0.0
    %1614 = vmatpush1.msra.mxu0 0.0
    %1615 = vmatprep.subr.mxu0 0.0
    %1616 = vmatpush1.msra.mxu0 0.0
    %1617 = vmatprep.subr.mxu0 0.0
    %1618 = vmatpush1.msra.mxu0 0.0
    %1619 = vmatprep.subr.mxu0 0.0
    %1620 = vmatpush1.msra.mxu0 0.0
    %1621 = vmatprep.subr.mxu0 0.0
    %1622 = vmatpush1.msra.mxu0 0.0
    %1623 = vmatprep.subr.mxu0 0.0
    %1624 = vmatpush1.msra.mxu0 0.0
    %1625 = vmatprep.subr.mxu0 0.0
    %1626 = vmatpush1.msra.mxu0 0.0
    %1627 = vmatprep.subr.mxu0 0.0
    %1628 = vmatpush1.msra.mxu0 0.0
    %1629 = vmatprep.subr.mxu0 0.0
    %1630 = vmatpush1.msra.mxu0 0.0
    %1631 = vmatprep.subr.mxu0 0.0
    %1632 = vmatpush1.msra.mxu0 0.0
    %1633 = vmatprep.subr.mxu0 0.0
    %1634 = vmatpush1.msra.mxu0 0.0
    %1635 = vmatprep.subr.mxu0 0.0
    %1636 = vmatpush1.msra.mxu0 0.0
    %1637 = vmatprep.subr.mxu0 0.0
    %1638 = vmatpush1.msra.mxu0 0.0
    %1639 = vmatprep.subr.mxu0 0.0
    %1640 = vmatpush1.msra.mxu0 0.0
    %1641 = vmatprep.subr.mxu0 0.0
    %1642 = vmatpush1.msra.mxu0 0.0
    %1643 = vmatprep.subr.mxu0 0.0
    %1644 = vmatpush1.msra.mxu0 0.0
    %1645 = vmatprep.subr.mxu0 0.0
    %1646 = vmatpush1.msra.mxu0 0.0
    %1647 = vmatprep.subr.mxu0 0.0
    %1648 = vmatpush1.msra.mxu0 0.0
    %1649 = vmatprep.subr.mxu0 0.0
    %1650 = vmatpush1.msra.mxu0 0.0
    %1651 = vmatprep.mubr.f32.mxu0 0.0
    %1652 = vmatmul.mubr.f32.gmra.mrb[0].mxu0 %v1585
    %v1653 = vpop.f32.mrb[0].mxu0
    %v1654 = vadd.f32 0.0, %v1653
    %v1655 = vpop.f32.mrb[0].mxu0
    %1656 = vdwg.mxu0
    %v1658 = vrot.slane %v1654, 6
    %v1659 = vrot.slane %v1654, 7
    %v1662 = vadd.f32 %v236, %v1658
    %v1663 = vadd.f32 %v241, %v1659
    %v1664 = vtanh.pop %v1662
    %v1665 = vtanh.pop %v1663
    %v1666 = vxor.u32 %v1662, 2147483648
    %v1667 = vxor.u32 %v1663, 2147483648
    %v1668 = vmul.f32 %v1666, 1.442695
    %v1669 = vpow.pop %v1668
    %v1670 = vmul.f32 %v1667, 1.442695
    %v1671 = vpow.pop %v1670
    %v1672 = vadd.f32 %v1669, 1.0
    %v1673 = vadd.f32 %v1671, 1.0
    %v1674 = vrcp.pop %v1672
    %v1675 = vmul.f32 1.0, %v1674
    %v1676 = vrcp.pop %v1673
    %v1677 = vmul.f32 1.0, %v1676
    %v1680 = vrot.slane %v1664, 2
    %v1681 = vrot.slane %v1665, 1
    %v1682 = vsel %vm354, %v1681, %v1680
    %v1686 = vrot.slane %v1675, 2
    %v1687 = vrot.slane %v1677, 1
    %v1688 = vsel %vm354, %v1687, %v1686
    %v1690 = vsel %vm256, %v1682, %v1688
    %v1691 = vmul.f32 %v1690, %v1537
    %1693 = vrot.lane.b32.xlu0 %v1690, 64
    %v1694 = vpop.permute.xlu0 %1693
    %v1696 = vmul.f32 %v1690, %v1694
    %1698 = vrot.lane.b32.xlu0 %v1696, 32
    %v1699 = vpop.permute.xlu0 %1698
    %v1701 = vadd.f32 %v1691, %v1699
    %v1702 = vtanh.pop %v1701
    %1704 = vrot.lane.b32.xlu0 %v1702, 64
    %v1705 = vpop.permute.xlu0 %1704
    %v1707 = vmul.f32 %v1690, %v1705
    %v1710 = vunpack.c.l.s4 1966171168
    %v1711 = vunpack.c.0.s8 %v1710
    %v1712 = vlaneseq
    %v1713 = vshrl.u32 %v1712, 7
    %v1714 = vsub.s32 %v1711, %v1713
    %v1715 = vrot.slane %v1707, %v1714
    %v1716 = vcombine.high %v1715, %v1715
    %v1718 = vunpack.c.l.s4 1966171168
    %v1719 = vunpack.c.0.s8 %v1718
    %v1720 = vlaneseq
    %v1721 = vshrl.u32 %v1720, 7
    %v1722 = vsub.s32 %v1719, %v1721
    %v1723 = vrot.slane %v1715, %v1722
    %v1725 = vunpack.c.l.s4 1966171168
    %v1726 = vunpack.c.0.s8 %v1725
    %v1727 = vlaneseq
    %v1728 = vshrl.u32 %v1727, 7
    %v1729 = vsub.s32 %v1726, %v1728
    %v1730 = vrot.slane %v1716, %v1729
    %v1731 = vlaneseq
    %v1732 = vshrl.u32 %v1731, 7
    %v1733 = vsub.s32 0, %v1732
    %v1734 = vrot.slane %v1723, %v1733
    %v1735 = vlaneseq
    %v1736 = vshrl.u32 %v1735, 7
    %v1737 = vsub.s32 0, %v1736
    %v1738 = vrot.slane %v1730, %v1737
    %1739 = vrot.lane.b32.xlu0 %v1734, 32
    %v1740 = vpop.permute.xlu0 %1739
    %1741 = vrot.lane.b32.xlu0 %v1738, 32
    %v1742 = vpop.permute.xlu0 %1741
    %1745 = vst.msk [vmem:[#allocation2 + $0x2] sm:$0x1] %vm1419, %v1740
    %1746 = vst.msk [vmem:[#allocation2 + $0xa] sm:$0x1] %vm1419, %v1742
    %1747 = vrot.lane.b32.xlu0 %v1707, 32
    %v1748 = vpop.permute.xlu0 %1747
    %v1749 = vsel %vm257, %v1748, 0
    %1751 = vmatprep.subr.mxu0 0.0
    %1752 = vmatpush1.msra.mxu0 %v248
    %1753 = vmatprep.subr.mxu0 0.0
    %1754 = vmatpush1.msra.mxu0 %v249
    %1755 = vmatprep.subr.mxu0 0.0
    %1756 = vmatpush1.msra.mxu0 %v250
    %1757 = vmatprep.subr.mxu0 0.0
    %1758 = vmatpush1.msra.mxu0 %v251
    %1759 = vmatprep.subr.mxu0 0.0
    %1760 = vmatpush1.msra.mxu0 0.0
    %1761 = vmatprep.subr.mxu0 0.0
    %1762 = vmatpush1.msra.mxu0 0.0
    %1763 = vmatprep.subr.mxu0 0.0
    %1764 = vmatpush1.msra.mxu0 0.0
    %1765 = vmatprep.subr.mxu0 0.0
    %1766 = vmatpush1.msra.mxu0 0.0
    %1767 = vmatprep.subr.mxu0 0.0
    %1768 = vmatpush1.msra.mxu0 0.0
    %1769 = vmatprep.subr.mxu0 0.0
    %1770 = vmatpush1.msra.mxu0 0.0
    %1771 = vmatprep.subr.mxu0 0.0
    %1772 = vmatpush1.msra.mxu0 0.0
    %1773 = vmatprep.subr.mxu0 0.0
    %1774 = vmatpush1.msra.mxu0 0.0
    %1775 = vmatprep.subr.mxu0 0.0
    %1776 = vmatpush1.msra.mxu0 0.0
    %1777 = vmatprep.subr.mxu0 0.0
    %1778 = vmatpush1.msra.mxu0 0.0
    %1779 = vmatprep.subr.mxu0 0.0
    %1780 = vmatpush1.msra.mxu0 0.0
    %1781 = vmatprep.subr.mxu0 0.0
    %1782 = vmatpush1.msra.mxu0 0.0
    %1783 = vmatprep.subr.mxu0 0.0
    %1784 = vmatpush1.msra.mxu0 0.0
    %1785 = vmatprep.subr.mxu0 0.0
    %1786 = vmatpush1.msra.mxu0 0.0
    %1787 = vmatprep.subr.mxu0 0.0
    %1788 = vmatpush1.msra.mxu0 0.0
    %1789 = vmatprep.subr.mxu0 0.0
    %1790 = vmatpush1.msra.mxu0 0.0
    %1791 = vmatprep.subr.mxu0 0.0
    %1792 = vmatpush1.msra.mxu0 0.0
    %1793 = vmatprep.subr.mxu0 0.0
    %1794 = vmatpush1.msra.mxu0 0.0
    %1795 = vmatprep.subr.mxu0 0.0
    %1796 = vmatpush1.msra.mxu0 0.0
    %1797 = vmatprep.subr.mxu0 0.0
    %1798 = vmatpush1.msra.mxu0 0.0
    %1799 = vmatprep.subr.mxu0 0.0
    %1800 = vmatpush1.msra.mxu0 0.0
    %1801 = vmatprep.subr.mxu0 0.0
    %1802 = vmatpush1.msra.mxu0 0.0
    %1803 = vmatprep.subr.mxu0 0.0
    %1804 = vmatpush1.msra.mxu0 0.0
    %1805 = vmatprep.subr.mxu0 0.0
    %1806 = vmatpush1.msra.mxu0 0.0
    %1807 = vmatprep.subr.mxu0 0.0
    %1808 = vmatpush1.msra.mxu0 0.0
    %1809 = vmatprep.subr.mxu0 0.0
    %1810 = vmatpush1.msra.mxu0 0.0
    %1811 = vmatprep.subr.mxu0 0.0
    %1812 = vmatpush1.msra.mxu0 0.0
    %1813 = vmatprep.subr.mxu0 0.0
    %1814 = vmatpush1.msra.mxu0 0.0
    %1815 = vmatprep.mubr.f32.mxu0 0.0
    %1816 = vmatmul.mubr.f32.gmra.mrb[0].mxu0 %v1749
    %v1817 = vpop.f32.mrb[0].mxu0
    %v1818 = vadd.f32 0.0, %v1817
    %v1819 = vpop.f32.mrb[0].mxu0
    %1820 = vdwg.mxu0
    %v1822 = vrot.slane %v1818, 5
    %v1823 = vrot.slane %v1818, 6
    %v1826 = vadd.f32 %v236, %v1822
    %v1827 = vadd.f32 %v241, %v1823
    %v1828 = vtanh.pop %v1826
    %v1829 = vtanh.pop %v1827
    %v1830 = vxor.u32 %v1826, 2147483648
    %v1831 = vxor.u32 %v1827, 2147483648
    %v1832 = vmul.f32 %v1830, 1.442695
    %v1833 = vpow.pop %v1832
    %v1834 = vmul.f32 %v1831, 1.442695
    %v1835 = vpow.pop %v1834
    %v1836 = vadd.f32 %v1833, 1.0
    %v1837 = vadd.f32 %v1835, 1.0
    %v1838 = vrcp.pop %v1836
    %v1839 = vmul.f32 1.0, %v1838
    %v1840 = vrcp.pop %v1837
    %v1841 = vmul.f32 1.0, %v1840
    %v1844 = vrot.slane %v1828, 3
    %v1845 = vrot.slane %v1829, 2
    %v1846 = vsel %vm354, %v1845, %v1844
    %v1850 = vrot.slane %v1839, 3
    %v1851 = vrot.slane %v1841, 2
    %v1852 = vsel %vm354, %v1851, %v1850
    %v1854 = vsel %vm256, %v1846, %v1852
    %v1855 = vmul.f32 %v1854, %v1701
    %1857 = vrot.lane.b32.xlu0 %v1854, 64
    %v1858 = vpop.permute.xlu0 %1857
    %v1860 = vmul.f32 %v1854, %v1858
    %1862 = vrot.lane.b32.xlu0 %v1860, 32
    %v1863 = vpop.permute.xlu0 %1862
    %v1865 = vadd.f32 %v1855, %v1863
    %v1866 = vtanh.pop %v1865
    %1868 = vrot.lane.b32.xlu0 %v1866, 64
    %v1869 = vpop.permute.xlu0 %1868
    %v1871 = vmul.f32 %v1854, %v1869
    %v1874 = vunpack.c.l.s4 1966171168
    %v1875 = vunpack.c.0.s8 %v1874
    %v1876 = vlaneseq
    %v1877 = vshrl.u32 %v1876, 7
    %v1878 = vsub.s32 %v1875, %v1877
    %v1879 = vrot.slane %v1871, %v1878
    %v1880 = vcombine.high %v1879, %v1879
    %v1882 = vunpack.c.l.s4 1966171168
    %v1883 = vunpack.c.0.s8 %v1882
    %v1884 = vlaneseq
    %v1885 = vshrl.u32 %v1884, 7
    %v1886 = vsub.s32 %v1883, %v1885
    %v1887 = vrot.slane %v1879, %v1886
    %v1889 = vunpack.c.l.s4 1966171168
    %v1890 = vunpack.c.0.s8 %v1889
    %v1891 = vlaneseq
    %v1892 = vshrl.u32 %v1891, 7
    %v1893 = vsub.s32 %v1890, %v1892
    %v1894 = vrot.slane %v1880, %v1893
    %v1895 = vlaneseq
    %v1896 = vshrl.u32 %v1895, 7
    %v1897 = vsub.s32 0, %v1896
    %v1898 = vrot.slane %v1887, %v1897
    %v1899 = vlaneseq
    %v1900 = vshrl.u32 %v1899, 7
    %v1901 = vsub.s32 0, %v1900
    %v1902 = vrot.slane %v1894, %v1901
    %1903 = vrot.lane.b32.xlu0 %v1898, 32
    %v1904 = vpop.permute.xlu0 %1903
    %1905 = vrot.lane.b32.xlu0 %v1902, 32
    %v1906 = vpop.permute.xlu0 %1905
    %1909 = vst.msk [vmem:[#allocation2 + $0x3] sm:$0x1] %vm1419, %v1904
    %1910 = vst.msk [vmem:[#allocation2 + $0xb] sm:$0x1] %vm1419, %v1906
    %1911 = vrot.lane.b32.xlu0 %v1871, 32
    %v1912 = vpop.permute.xlu0 %1911
    %v1913 = vsel %vm257, %v1912, 0
    %1915 = vmatprep.subr.mxu0 0.0
    %1916 = vmatpush1.msra.mxu0 %v248
    %1917 = vmatprep.subr.mxu0 0.0
    %1918 = vmatpush1.msra.mxu0 %v249
    %1919 = vmatprep.subr.mxu0 0.0
    %1920 = vmatpush1.msra.mxu0 %v250
    %1921 = vmatprep.subr.mxu0 0.0
    %1922 = vmatpush1.msra.mxu0 %v251
    %1923 = vmatprep.subr.mxu0 0.0
    %1924 = vmatpush1.msra.mxu0 0.0
    %1925 = vmatprep.subr.mxu0 0.0
    %1926 = vmatpush1.msra.mxu0 0.0
    %1927 = vmatprep.subr.mxu0 0.0
    %1928 = vmatpush1.msra.mxu0 0.0
    %1929 = vmatprep.subr.mxu0 0.0
    %1930 = vmatpush1.msra.mxu0 0.0
    %1931 = vmatprep.subr.mxu0 0.0
    %1932 = vmatpush1.msra.mxu0 0.0
    %1933 = vmatprep.subr.mxu0 0.0
    %1934 = vmatpush1.msra.mxu0 0.0
    %1935 = vmatprep.subr.mxu0 0.0
    %1936 = vmatpush1.msra.mxu0 0.0
    %1937 = vmatprep.subr.mxu0 0.0
    %1938 = vmatpush1.msra.mxu0 0.0
    %1939 = vmatprep.subr.mxu0 0.0
    %1940 = vmatpush1.msra.mxu0 0.0
    %1941 = vmatprep.subr.mxu0 0.0
    %1942 = vmatpush1.msra.mxu0 0.0
    %1943 = vmatprep.subr.mxu0 0.0
    %1944 = vmatpush1.msra.mxu0 0.0
    %1945 = vmatprep.subr.mxu0 0.0
    %1946 = vmatpush1.msra.mxu0 0.0
    %1947 = vmatprep.subr.mxu0 0.0
    %1948 = vmatpush1.msra.mxu0 0.0
    %1949 = vmatprep.subr.mxu0 0.0
    %1950 = vmatpush1.msra.mxu0 0.0
    %1951 = vmatprep.subr.mxu0 0.0
    %1952 = vmatpush1.msra.mxu0 0.0
    %1953 = vmatprep.subr.mxu0 0.0
    %1954 = vmatpush1.msra.mxu0 0.0
    %1955 = vmatprep.subr.mxu0 0.0
    %1956 = vmatpush1.msra.mxu0 0.0
    %1957 = vmatprep.subr.mxu0 0.0
    %1958 = vmatpush1.msra.mxu0 0.0
    %1959 = vmatprep.subr.mxu0 0.0
    %1960 = vmatpush1.msra.mxu0 0.0
    %1961 = vmatprep.subr.mxu0 0.0
    %1962 = vmatpush1.msra.mxu0 0.0
    %1963 = vmatprep.subr.mxu0 0.0
    %1964 = vmatpush1.msra.mxu0 0.0
    %1965 = vmatprep.subr.mxu0 0.0
    %1966 = vmatpush1.msra.mxu0 0.0
    %1967 = vmatprep.subr.mxu0 0.0
    %1968 = vmatpush1.msra.mxu0 0.0
    %1969 = vmatprep.subr.mxu0 0.0
    %1970 = vmatpush1.msra.mxu0 0.0
    %1971 = vmatprep.subr.mxu0 0.0
    %1972 = vmatpush1.msra.mxu0 0.0
    %1973 = vmatprep.subr.mxu0 0.0
    %1974 = vmatpush1.msra.mxu0 0.0
    %1975 = vmatprep.subr.mxu0 0.0
    %1976 = vmatpush1.msra.mxu0 0.0
    %1977 = vmatprep.subr.mxu0 0.0
    %1978 = vmatpush1.msra.mxu0 0.0
    %1979 = vmatprep.mubr.f32.mxu0 0.0
    %1980 = vmatmul.mubr.f32.gmra.mrb[0].mxu0 %v1913
    %v1981 = vpop.f32.mrb[0].mxu0
    %v1982 = vadd.f32 0.0, %v1981
    %v1983 = vpop.f32.mrb[0].mxu0
    %1984 = vdwg.mxu0
    %v1986 = vrot.slane %v1982, 4
    %v1987 = vrot.slane %v1982, 5
    %v1990 = vadd.f32 %v236, %v1986
    %v1991 = vadd.f32 %v241, %v1987
    %v1992 = vtanh.pop %v1990
    %v1993 = vtanh.pop %v1991
    %v1994 = vxor.u32 %v1990, 2147483648
    %v1995 = vxor.u32 %v1991, 2147483648
    %v1996 = vmul.f32 %v1994, 1.442695
    %v1997 = vpow.pop %v1996
    %v1998 = vmul.f32 %v1995, 1.442695
    %v1999 = vpow.pop %v1998
    %v2000 = vadd.f32 %v1997, 1.0
    %v2001 = vadd.f32 %v1999, 1.0
    %v2002 = vrcp.pop %v2000
    %v2003 = vmul.f32 1.0, %v2002
    %v2004 = vrcp.pop %v2001
    %v2005 = vmul.f32 1.0, %v2004
    %v2008 = vrot.slane %v1992, 4
    %v2009 = vrot.slane %v1993, 3
    %v2010 = vsel %vm354, %v2009, %v2008
    %v2014 = vrot.slane %v2003, 4
    %v2015 = vrot.slane %v2005, 3
    %v2016 = vsel %vm354, %v2015, %v2014
    %v2018 = vsel %vm256, %v2010, %v2016
    %v2019 = vmul.f32 %v2018, %v1865
    %2021 = vrot.lane.b32.xlu0 %v2018, 64
    %v2022 = vpop.permute.xlu0 %2021
    %v2024 = vmul.f32 %v2018, %v2022
    %2026 = vrot.lane.b32.xlu0 %v2024, 32
    %v2027 = vpop.permute.xlu0 %2026
    %v2029 = vadd.f32 %v2019, %v2027
    %v2030 = vtanh.pop %v2029
    %2032 = vrot.lane.b32.xlu0 %v2030, 64
    %v2033 = vpop.permute.xlu0 %2032
    %v2035 = vmul.f32 %v2018, %v2033
    %v2038 = vunpack.c.l.s4 1966171168
    %v2039 = vunpack.c.0.s8 %v2038
    %v2040 = vlaneseq
    %v2041 = vshrl.u32 %v2040, 7
    %v2042 = vsub.s32 %v2039, %v2041
    %v2043 = vrot.slane %v2035, %v2042
    %v2044 = vcombine.high %v2043, %v2043
    %v2046 = vunpack.c.l.s4 1966171168
    %v2047 = vunpack.c.0.s8 %v2046
    %v2048 = vlaneseq
    %v2049 = vshrl.u32 %v2048, 7
    %v2050 = vsub.s32 %v2047, %v2049
    %v2051 = vrot.slane %v2043, %v2050
    %v2053 = vunpack.c.l.s4 1966171168
    %v2054 = vunpack.c.0.s8 %v2053
    %v2055 = vlaneseq
    %v2056 = vshrl.u32 %v2055, 7
    %v2057 = vsub.s32 %v2054, %v2056
    %v2058 = vrot.slane %v2044, %v2057
    %v2059 = vlaneseq
    %v2060 = vshrl.u32 %v2059, 7
    %v2061 = vsub.s32 0, %v2060
    %v2062 = vrot.slane %v2051, %v2061
    %v2063 = vlaneseq
    %v2064 = vshrl.u32 %v2063, 7
    %v2065 = vsub.s32 0, %v2064
    %v2066 = vrot.slane %v2058, %v2065
    %2067 = vrot.lane.b32.xlu0 %v2062, 32
    %v2068 = vpop.permute.xlu0 %2067
    %2069 = vrot.lane.b32.xlu0 %v2066, 32
    %v2070 = vpop.permute.xlu0 %2069
    %2073 = vst.msk [vmem:[#allocation2 + $0x4] sm:$0x1] %vm1419, %v2068
    %2074 = vst.msk [vmem:[#allocation2 + $0xc] sm:$0x1] %vm1419, %v2070
    %2075 = vrot.lane.b32.xlu0 %v2035, 32
    %v2076 = vpop.permute.xlu0 %2075
    %v2077 = vsel %vm257, %v2076, 0
    %2079 = vmatprep.subr.mxu0 0.0
    %2080 = vmatpush1.msra.mxu0 %v248
    %2081 = vmatprep.subr.mxu0 0.0
    %2082 = vmatpush1.msra.mxu0 %v249
    %2083 = vmatprep.subr.mxu0 0.0
    %2084 = vmatpush1.msra.mxu0 %v250
    %2085 = vmatprep.subr.mxu0 0.0
    %2086 = vmatpush1.msra.mxu0 %v251
    %2087 = vmatprep.subr.mxu0 0.0
    %2088 = vmatpush1.msra.mxu0 0.0
    %2089 = vmatprep.subr.mxu0 0.0
    %2090 = vmatpush1.msra.mxu0 0.0
    %2091 = vmatprep.subr.mxu0 0.0
    %2092 = vmatpush1.msra.mxu0 0.0
    %2093 = vmatprep.subr.mxu0 0.0
    %2094 = vmatpush1.msra.mxu0 0.0
    %2095 = vmatprep.subr.mxu0 0.0
    %2096 = vmatpush1.msra.mxu0 0.0
    %2097 = vmatprep.subr.mxu0 0.0
    %2098 = vmatpush1.msra.mxu0 0.0
    %2099 = vmatprep.subr.mxu0 0.0
    %2100 = vmatpush1.msra.mxu0 0.0
    %2101 = vmatprep.subr.mxu0 0.0
    %2102 = vmatpush1.msra.mxu0 0.0
    %2103 = vmatprep.subr.mxu0 0.0
    %2104 = vmatpush1.msra.mxu0 0.0
    %2105 = vmatprep.subr.mxu0 0.0
    %2106 = vmatpush1.msra.mxu0 0.0
    %2107 = vmatprep.subr.mxu0 0.0
    %2108 = vmatpush1.msra.mxu0 0.0
    %2109 = vmatprep.subr.mxu0 0.0
    %2110 = vmatpush1.msra.mxu0 0.0
    %2111 = vmatprep.subr.mxu0 0.0
    %2112 = vmatpush1.msra.mxu0 0.0
    %2113 = vmatprep.subr.mxu0 0.0
    %2114 = vmatpush1.msra.mxu0 0.0
    %2115 = vmatprep.subr.mxu0 0.0
    %2116 = vmatpush1.msra.mxu0 0.0
    %2117 = vmatprep.subr.mxu0 0.0
    %2118 = vmatpush1.msra.mxu0 0.0
    %2119 = vmatprep.subr.mxu0 0.0
    %2120 = vmatpush1.msra.mxu0 0.0
    %2121 = vmatprep.subr.mxu0 0.0
    %2122 = vmatpush1.msra.mxu0 0.0
    %2123 = vmatprep.subr.mxu0 0.0
    %2124 = vmatpush1.msra.mxu0 0.0
    %2125 = vmatprep.subr.mxu0 0.0
    %2126 = vmatpush1.msra.mxu0 0.0
    %2127 = vmatprep.subr.mxu0 0.0
    %2128 = vmatpush1.msra.mxu0 0.0
    %2129 = vmatprep.subr.mxu0 0.0
    %2130 = vmatpush1.msra.mxu0 0.0
    %2131 = vmatprep.subr.mxu0 0.0
    %2132 = vmatpush1.msra.mxu0 0.0
    %2133 = vmatprep.subr.mxu0 0.0
    %2134 = vmatpush1.msra.mxu0 0.0
    %2135 = vmatprep.subr.mxu0 0.0
    %2136 = vmatpush1.msra.mxu0 0.0
    %2137 = vmatprep.subr.mxu0 0.0
    %2138 = vmatpush1.msra.mxu0 0.0
    %2139 = vmatprep.subr.mxu0 0.0
    %2140 = vmatpush1.msra.mxu0 0.0
    %2141 = vmatprep.subr.mxu0 0.0
    %2142 = vmatpush1.msra.mxu0 0.0
    %2143 = vmatprep.mubr.f32.mxu0 0.0
    %2144 = vmatmul.mubr.f32.gmra.mrb[0].mxu0 %v2077
    %v2145 = vpop.f32.mrb[0].mxu0
    %v2146 = vadd.f32 0.0, %v2145
    %v2147 = vpop.f32.mrb[0].mxu0
    %2148 = vdwg.mxu0
    %v2150 = vrot.slane %v2146, 3
    %v2151 = vrot.slane %v2146, 4
    %v2154 = vadd.f32 %v236, %v2150
    %v2155 = vadd.f32 %v241, %v2151
    %v2156 = vtanh.pop %v2154
    %v2157 = vtanh.pop %v2155
    %v2158 = vxor.u32 %v2154, 2147483648
    %v2159 = vxor.u32 %v2155, 2147483648
    %v2160 = vmul.f32 %v2158, 1.442695
    %v2161 = vpow.pop %v2160
    %v2162 = vmul.f32 %v2159, 1.442695
    %v2163 = vpow.pop %v2162
    %v2164 = vadd.f32 %v2161, 1.0
    %v2165 = vadd.f32 %v2163, 1.0
    %v2166 = vrcp.pop %v2164
    %v2167 = vmul.f32 1.0, %v2166
    %v2168 = vrcp.pop %v2165
    %v2169 = vmul.f32 1.0, %v2168
    %v2172 = vrot.slane %v2156, 5
    %v2173 = vrot.slane %v2157, 4
    %v2174 = vsel %vm354, %v2173, %v2172
    %v2178 = vrot.slane %v2167, 5
    %v2179 = vrot.slane %v2169, 4
    %v2180 = vsel %vm354, %v2179, %v2178
    %v2182 = vsel %vm256, %v2174, %v2180
    %v2183 = vmul.f32 %v2182, %v2029
    %2185 = vrot.lane.b32.xlu0 %v2182, 64
    %v2186 = vpop.permute.xlu0 %2185
    %v2188 = vmul.f32 %v2182, %v2186
    %2190 = vrot.lane.b32.xlu0 %v2188, 32
    %v2191 = vpop.permute.xlu0 %2190
    %v2193 = vadd.f32 %v2183, %v2191
    %v2194 = vtanh.pop %v2193
    %2196 = vrot.lane.b32.xlu0 %v2194, 64
    %v2197 = vpop.permute.xlu0 %2196
    %v2199 = vmul.f32 %v2182, %v2197
    %v2202 = vunpack.c.l.s4 1966171168
    %v2203 = vunpack.c.0.s8 %v2202
    %v2204 = vlaneseq
    %v2205 = vshrl.u32 %v2204, 7
    %v2206 = vsub.s32 %v2203, %v2205
    %v2207 = vrot.slane %v2199, %v2206
    %v2208 = vcombine.high %v2207, %v2207
    %v2210 = vunpack.c.l.s4 1966171168
    %v2211 = vunpack.c.0.s8 %v2210
    %v2212 = vlaneseq
    %v2213 = vshrl.u32 %v2212, 7
    %v2214 = vsub.s32 %v2211, %v2213
    %v2215 = vrot.slane %v2207, %v2214
    %v2217 = vunpack.c.l.s4 1966171168
    %v2218 = vunpack.c.0.s8 %v2217
    %v2219 = vlaneseq
    %v2220 = vshrl.u32 %v2219, 7
    %v2221 = vsub.s32 %v2218, %v2220
    %v2222 = vrot.slane %v2208, %v2221
    %v2223 = vlaneseq
    %v2224 = vshrl.u32 %v2223, 7
    %v2225 = vsub.s32 0, %v2224
    %v2226 = vrot.slane %v2215, %v2225
    %v2227 = vlaneseq
    %v2228 = vshrl.u32 %v2227, 7
    %v2229 = vsub.s32 0, %v2228
    %v2230 = vrot.slane %v2222, %v2229
    %2231 = vrot.lane.b32.xlu0 %v2226, 32
    %v2232 = vpop.permute.xlu0 %2231
    %2233 = vrot.lane.b32.xlu0 %v2230, 32
    %v2234 = vpop.permute.xlu0 %2233
    %2237 = vst.msk [vmem:[#allocation2 + $0x5] sm:$0x1] %vm1419, %v2232
    %2238 = vst.msk [vmem:[#allocation2 + $0xd] sm:$0x1] %vm1419, %v2234
    %2239 = vrot.lane.b32.xlu0 %v2199, 32
    %v2240 = vpop.permute.xlu0 %2239
    %v2241 = vsel %vm257, %v2240, 0
    %2243 = vmatprep.subr.mxu0 0.0
    %2244 = vmatpush1.msra.mxu0 %v248
    %2245 = vmatprep.subr.mxu0 0.0
    %2246 = vmatpush1.msra.mxu0 %v249
    %2247 = vmatprep.subr.mxu0 0.0
    %2248 = vmatpush1.msra.mxu0 %v250
    %2249 = vmatprep.subr.mxu0 0.0
    %2250 = vmatpush1.msra.mxu0 %v251
    %2251 = vmatprep.subr.mxu0 0.0
    %2252 = vmatpush1.msra.mxu0 0.0
    %2253 = vmatprep.subr.mxu0 0.0
    %2254 = vmatpush1.msra.mxu0 0.0
    %2255 = vmatprep.subr.mxu0 0.0
    %2256 = vmatpush1.msra.mxu0 0.0
    %2257 = vmatprep.subr.mxu0 0.0
    %2258 = vmatpush1.msra.mxu0 0.0
    %2259 = vmatprep.subr.mxu0 0.0
    %2260 = vmatpush1.msra.mxu0 0.0
    %2261 = vmatprep.subr.mxu0 0.0
    %2262 = vmatpush1.msra.mxu0 0.0
    %2263 = vmatprep.subr.mxu0 0.0
    %2264 = vmatpush1.msra.mxu0 0.0
    %2265 = vmatprep.subr.mxu0 0.0
    %2266 = vmatpush1.msra.mxu0 0.0
    %2267 = vmatprep.subr.mxu0 0.0
    %2268 = vmatpush1.msra.mxu0 0.0
    %2269 = vmatprep.subr.mxu0 0.0
    %2270 = vmatpush1.msra.mxu0 0.0
    %2271 = vmatprep.subr.mxu0 0.0
    %2272 = vmatpush1.msra.mxu0 0.0
    %2273 = vmatprep.subr.mxu0 0.0
    %2274 = vmatpush1.msra.mxu0 0.0
    %2275 = vmatprep.subr.mxu0 0.0
    %2276 = vmatpush1.msra.mxu0 0.0
    %2277 = vmatprep.subr.mxu0 0.0
    %2278 = vmatpush1.msra.mxu0 0.0
    %2279 = vmatprep.subr.mxu0 0.0
    %2280 = vmatpush1.msra.mxu0 0.0
    %2281 = vmatprep.subr.mxu0 0.0
    %2282 = vmatpush1.msra.mxu0 0.0
    %2283 = vmatprep.subr.mxu0 0.0
    %2284 = vmatpush1.msra.mxu0 0.0
    %2285 = vmatprep.subr.mxu0 0.0
    %2286 = vmatpush1.msra.mxu0 0.0
    %2287 = vmatprep.subr.mxu0 0.0
    %2288 = vmatpush1.msra.mxu0 0.0
    %2289 = vmatprep.subr.mxu0 0.0
    %2290 = vmatpush1.msra.mxu0 0.0
    %2291 = vmatprep.subr.mxu0 0.0
    %2292 = vmatpush1.msra.mxu0 0.0
    %2293 = vmatprep.subr.mxu0 0.0
    %2294 = vmatpush1.msra.mxu0 0.0
    %2295 = vmatprep.subr.mxu0 0.0
    %2296 = vmatpush1.msra.mxu0 0.0
    %2297 = vmatprep.subr.mxu0 0.0
    %2298 = vmatpush1.msra.mxu0 0.0
    %2299 = vmatprep.subr.mxu0 0.0
    %2300 = vmatpush1.msra.mxu0 0.0
    %2301 = vmatprep.subr.mxu0 0.0
    %2302 = vmatpush1.msra.mxu0 0.0
    %2303 = vmatprep.subr.mxu0 0.0
    %2304 = vmatpush1.msra.mxu0 0.0
    %2305 = vmatprep.subr.mxu0 0.0
    %2306 = vmatpush1.msra.mxu0 0.0
    %2307 = vmatprep.mubr.f32.mxu0 0.0
    %2308 = vmatmul.mubr.f32.gmra.mrb[0].mxu0 %v2241
    %v2309 = vpop.f32.mrb[0].mxu0
    %v2310 = vadd.f32 0.0, %v2309
    %v2311 = vpop.f32.mrb[0].mxu0
    %2312 = vdwg.mxu0
    %v2314 = vrot.slane %v2310, 2
    %v2315 = vrot.slane %v2310, 3
    %v2318 = vadd.f32 %v236, %v2314
    %v2319 = vadd.f32 %v241, %v2315
    %v2320 = vtanh.pop %v2318
    %v2321 = vtanh.pop %v2319
    %v2322 = vxor.u32 %v2318, 2147483648
    %v2323 = vxor.u32 %v2319, 2147483648
    %v2324 = vmul.f32 %v2322, 1.442695
    %v2325 = vpow.pop %v2324
    %v2326 = vmul.f32 %v2323, 1.442695
    %v2327 = vpow.pop %v2326
    %v2328 = vadd.f32 %v2325, 1.0
    %v2329 = vadd.f32 %v2327, 1.0
    %v2330 = vrcp.pop %v2328
    %v2331 = vmul.f32 1.0, %v2330
    %v2332 = vrcp.pop %v2329
    %v2333 = vmul.f32 1.0, %v2332
    %v2336 = vrot.slane %v2320, 6
    %v2337 = vrot.slane %v2321, 5
    %v2338 = vsel %vm354, %v2337, %v2336
    %v2342 = vrot.slane %v2331, 6
    %v2343 = vrot.slane %v2333, 5
    %v2344 = vsel %vm354, %v2343, %v2342
    %v2346 = vsel %vm256, %v2338, %v2344
    %v2347 = vmul.f32 %v2346, %v2193
    %2349 = vrot.lane.b32.xlu0 %v2346, 64
    %v2350 = vpop.permute.xlu0 %2349
    %v2352 = vmul.f32 %v2346, %v2350
    %2354 = vrot.lane.b32.xlu0 %v2352, 32
    %v2355 = vpop.permute.xlu0 %2354
    %v2357 = vadd.f32 %v2347, %v2355
    %v2358 = vtanh.pop %v2357
    %2360 = vrot.lane.b32.xlu0 %v2358, 64
    %v2361 = vpop.permute.xlu0 %2360
    %v2363 = vmul.f32 %v2346, %v2361
    %v2366 = vunpack.c.l.s4 1966171168
    %v2367 = vunpack.c.0.s8 %v2366
    %v2368 = vlaneseq
    %v2369 = vshrl.u32 %v2368, 7
    %v2370 = vsub.s32 %v2367, %v2369
    %v2371 = vrot.slane %v2363, %v2370
    %v2372 = vcombine.high %v2371, %v2371
    %v2374 = vunpack.c.l.s4 1966171168
    %v2375 = vunpack.c.0.s8 %v2374
    %v2376 = vlaneseq
    %v2377 = vshrl.u32 %v2376, 7
    %v2378 = vsub.s32 %v2375, %v2377
    %v2379 = vrot.slane %v2371, %v2378
    %v2381 = vunpack.c.l.s4 1966171168
    %v2382 = vunpack.c.0.s8 %v2381
    %v2383 = vlaneseq
    %v2384 = vshrl.u32 %v2383, 7
    %v2385 = vsub.s32 %v2382, %v2384
    %v2386 = vrot.slane %v2372, %v2385
    %v2387 = vlaneseq
    %v2388 = vshrl.u32 %v2387, 7
    %v2389 = vsub.s32 0, %v2388
    %v2390 = vrot.slane %v2379, %v2389
    %v2391 = vlaneseq
    %v2392 = vshrl.u32 %v2391, 7
    %v2393 = vsub.s32 0, %v2392
    %v2394 = vrot.slane %v2386, %v2393
    %2395 = vrot.lane.b32.xlu0 %v2390, 32
    %v2396 = vpop.permute.xlu0 %2395
    %2397 = vrot.lane.b32.xlu0 %v2394, 32
    %v2398 = vpop.permute.xlu0 %2397
    %2401 = vst.msk [vmem:[#allocation2 + $0x6] sm:$0x1] %vm1419, %v2396
    %2402 = vst.msk [vmem:[#allocation2 + $0xe] sm:$0x1] %vm1419, %v2398
    %2403 = vrot.lane.b32.xlu0 %v2363, 32
    %v2404 = vpop.permute.xlu0 %2403
    %v2405 = vsel %vm257, %v2404, 0
    %2407 = vmatprep.subr.mxu0 0.0
    %2408 = vmatpush1.msra.mxu0 %v248
    %2409 = vmatprep.subr.mxu0 0.0
    %2410 = vmatpush1.msra.mxu0 %v249
    %2411 = vmatprep.subr.mxu0 0.0
    %2412 = vmatpush1.msra.mxu0 %v250
    %2413 = vmatprep.subr.mxu0 0.0
    %2414 = vmatpush1.msra.mxu0 %v251
    %2415 = vmatprep.subr.mxu0 0.0
    %2416 = vmatpush1.msra.mxu0 0.0
    %2417 = vmatprep.subr.mxu0 0.0
    %2418 = vmatpush1.msra.mxu0 0.0
    %2419 = vmatprep.subr.mxu0 0.0
    %2420 = vmatpush1.msra.mxu0 0.0
    %2421 = vmatprep.subr.mxu0 0.0
    %2422 = vmatpush1.msra.mxu0 0.0
    %2423 = vmatprep.subr.mxu0 0.0
    %2424 = vmatpush1.msra.mxu0 0.0
    %2425 = vmatprep.subr.mxu0 0.0
    %2426 = vmatpush1.msra.mxu0 0.0
    %2427 = vmatprep.subr.mxu0 0.0
    %2428 = vmatpush1.msra.mxu0 0.0
    %2429 = vmatprep.subr.mxu0 0.0
    %2430 = vmatpush1.msra.mxu0 0.0
    %2431 = vmatprep.subr.mxu0 0.0
    %2432 = vmatpush1.msra.mxu0 0.0
    %2433 = vmatprep.subr.mxu0 0.0
    %2434 = vmatpush1.msra.mxu0 0.0
    %2435 = vmatprep.subr.mxu0 0.0
    %2436 = vmatpush1.msra.mxu0 0.0
    %2437 = vmatprep.subr.mxu0 0.0
    %2438 = vmatpush1.msra.mxu0 0.0
    %2439 = vmatprep.subr.mxu0 0.0
    %2440 = vmatpush1.msra.mxu0 0.0
    %2441 = vmatprep.subr.mxu0 0.0
    %2442 = vmatpush1.msra.mxu0 0.0
    %2443 = vmatprep.subr.mxu0 0.0
    %2444 = vmatpush1.msra.mxu0 0.0
    %2445 = vmatprep.subr.mxu0 0.0
    %2446 = vmatpush1.msra.mxu0 0.0
    %2447 = vmatprep.subr.mxu0 0.0
    %2448 = vmatpush1.msra.mxu0 0.0
    %2449 = vmatprep.subr.mxu0 0.0
    %2450 = vmatpush1.msra.mxu0 0.0
    %2451 = vmatprep.subr.mxu0 0.0
    %2452 = vmatpush1.msra.mxu0 0.0
    %2453 = vmatprep.subr.mxu0 0.0
    %2454 = vmatpush1.msra.mxu0 0.0
    %2455 = vmatprep.subr.mxu0 0.0
    %2456 = vmatpush1.msra.mxu0 0.0
    %2457 = vmatprep.subr.mxu0 0.0
    %2458 = vmatpush1.msra.mxu0 0.0
    %2459 = vmatprep.subr.mxu0 0.0
    %2460 = vmatpush1.msra.mxu0 0.0
    %2461 = vmatprep.subr.mxu0 0.0
    %2462 = vmatpush1.msra.mxu0 0.0
    %2463 = vmatprep.subr.mxu0 0.0
    %2464 = vmatpush1.msra.mxu0 0.0
    %2465 = vmatprep.subr.mxu0 0.0
    %2466 = vmatpush1.msra.mxu0 0.0
    %2467 = vmatprep.subr.mxu0 0.0
    %2468 = vmatpush1.msra.mxu0 0.0
    %2469 = vmatprep.subr.mxu0 0.0
    %2470 = vmatpush1.msra.mxu0 0.0
    %2471 = vmatprep.mubr.f32.mxu0 0.0
    %2472 = vmatmul.mubr.f32.gmra.mrb[0].mxu0 %v2405
    %v2473 = vpop.f32.mrb[0].mxu0
    %v2474 = vadd.f32 0.0, %v2473
    %v2475 = vpop.f32.mrb[0].mxu0
    %2476 = vdwg.mxu0
    %v2478 = vrot.slane %v2474, 1
    %v2479 = vrot.slane %v2474, 2
    %v2482 = vadd.f32 %v236, %v2478
    %v2483 = vadd.f32 %v241, %v2479
    %v2484 = vtanh.pop %v2482
    %v2485 = vtanh.pop %v2483
    %v2486 = vxor.u32 %v2482, 2147483648
    %v2487 = vxor.u32 %v2483, 2147483648
    %v2488 = vmul.f32 %v2486, 1.442695
    %v2489 = vpow.pop %v2488
    %v2490 = vmul.f32 %v2487, 1.442695
    %v2491 = vpow.pop %v2490
    %v2492 = vadd.f32 %v2489, 1.0
    %v2493 = vadd.f32 %v2491, 1.0
    %v2494 = vrcp.pop %v2492
    %v2495 = vmul.f32 1.0, %v2494
    %v2496 = vrcp.pop %v2493
    %v2497 = vmul.f32 1.0, %v2496
    %v2500 = vrot.slane %v2484, 7
    %v2501 = vrot.slane %v2485, 6
    %v2502 = vsel %vm354, %v2501, %v2500
    %v2506 = vrot.slane %v2495, 7
    %v2507 = vrot.slane %v2497, 6
    %v2508 = vsel %vm354, %v2507, %v2506
    %v2510 = vsel %vm256, %v2502, %v2508
    %v2511 = vmul.f32 %v2510, %v2357
    %2513 = vrot.lane.b32.xlu0 %v2510, 64
    %v2514 = vpop.permute.xlu0 %2513
    %v2516 = vmul.f32 %v2510, %v2514
    %2518 = vrot.lane.b32.xlu0 %v2516, 32
    %v2519 = vpop.permute.xlu0 %2518
    %v2521 = vadd.f32 %v2511, %v2519
    %v2522 = vtanh.pop %v2521
    %2524 = vrot.lane.b32.xlu0 %v2522, 64
    %v2525 = vpop.permute.xlu0 %2524
    %v2527 = vmul.f32 %v2510, %v2525
    %v2530 = vunpack.c.l.s4 1966171168
    %v2531 = vunpack.c.0.s8 %v2530
    %v2532 = vlaneseq
    %v2533 = vshrl.u32 %v2532, 7
    %v2534 = vsub.s32 %v2531, %v2533
    %v2535 = vrot.slane %v2527, %v2534
    %v2536 = vcombine.high %v2535, %v2535
    %v2538 = vunpack.c.l.s4 1966171168
    %v2539 = vunpack.c.0.s8 %v2538
    %v2540 = vlaneseq
    %v2541 = vshrl.u32 %v2540, 7
    %v2542 = vsub.s32 %v2539, %v2541
    %v2543 = vrot.slane %v2535, %v2542
    %v2545 = vunpack.c.l.s4 1966171168
    %v2546 = vunpack.c.0.s8 %v2545
    %v2547 = vlaneseq
    %v2548 = vshrl.u32 %v2547, 7
    %v2549 = vsub.s32 %v2546, %v2548
    %v2550 = vrot.slane %v2536, %v2549
    %v2551 = vlaneseq
    %v2552 = vshrl.u32 %v2551, 7
    %v2553 = vsub.s32 0, %v2552
    %v2554 = vrot.slane %v2543, %v2553
    %v2555 = vlaneseq
    %v2556 = vshrl.u32 %v2555, 7
    %v2557 = vsub.s32 0, %v2556
    %v2558 = vrot.slane %v2550, %v2557
    %2559 = vrot.lane.b32.xlu0 %v2554, 32
    %v2560 = vpop.permute.xlu0 %2559
    %2561 = vrot.lane.b32.xlu0 %v2558, 32
    %v2562 = vpop.permute.xlu0 %2561
    %2565 = vst.msk [vmem:[#allocation2 + $0x7] sm:$0x1] %vm1419, %v2560
    %2566 = vst.msk [vmem:[#allocation2 + $0xf] sm:$0x1] %vm1419, %v2562
    %v2567 = vld [vmem:[#allocation2] sm:$0xff]
    %v2568 = vld [vmem:[#allocation2 + $0x8] sm:$0xff]
    %v2569 = vld [vmem:[%s5] sm:$0xff]
    %v2570 = vld [vmem:[%s5 + $0x8] sm:$0xff]
    %v2571 = vld [vmem:[%s5 + $0x10] sm:$0xff]
    %v2572 = vld [vmem:[%s5 + $0x18] sm:$0xff]
    %v2573 = vld [vmem:[#allocation3] sm:$0x1]
    %v2575 = vlaneseq
    %v2576 = vshrl.u32 %v2575, 7
    %v2577 = vsub.s32 0, %v2576
    %v2578 = vrot.slane %v2573, %v2577
    %v2581 = vsel %vm257, %v2567, 0
    %v2584 = vsel %vm257, %v2568, 0
    %2586 = vmatprep.subr.mxu0 0.0
    %2587 = vmatpush1.msra.mxu0 %v2569
    %2588 = vmatprep.subr.mxu0 0.0
    %2589 = vmatpush1.msra.mxu0 %v2570
    %2590 = vmatprep.subr.mxu0 0.0
    %2591 = vmatpush1.msra.mxu0 %v2571
    %2592 = vmatprep.subr.mxu0 0.0
    %2593 = vmatpush1.msra.mxu0 %v2572
    %2594 = vmatprep.subr.mxu0 0.0
    %2595 = vmatpush1.msra.mxu0 0.0
    %2596 = vmatprep.subr.mxu0 0.0
    %2597 = vmatpush1.msra.mxu0 0.0
    %2598 = vmatprep.subr.mxu0 0.0
    %2599 = vmatpush1.msra.mxu0 0.0
    %2600 = vmatprep.subr.mxu0 0.0
    %2601 = vmatpush1.msra.mxu0 0.0
    %2602 = vmatprep.subr.mxu0 0.0
    %2603 = vmatpush1.msra.mxu0 0.0
    %2604 = vmatprep.subr.mxu0 0.0
    %2605 = vmatpush1.msra.mxu0 0.0
    %2606 = vmatprep.subr.mxu0 0.0
    %2607 = vmatpush1.msra.mxu0 0.0
    %2608 = vmatprep.subr.mxu0 0.0
    %2609 = vmatpush1.msra.mxu0 0.0
    %2610 = vmatprep.subr.mxu0 0.0
    %2611 = vmatpush1.msra.mxu0 0.0
    %2612 = vmatprep.subr.mxu0 0.0
    %2613 = vmatpush1.msra.mxu0 0.0
    %2614 = vmatprep.subr.mxu0 0.0
    %2615 = vmatpush1.msra.mxu0 0.0
    %2616 = vmatprep.subr.mxu0 0.0
    %2617 = vmatpush1.msra.mxu0 0.0
    %2618 = vmatprep.subr.mxu0 0.0
    %2619 = vmatpush1.msra.mxu0 0.0
    %2620 = vmatprep.subr.mxu0 0.0
    %2621 = vmatpush1.msra.mxu0 0.0
    %2622 = vmatprep.subr.mxu0 0.0
    %2623 = vmatpush1.msra.mxu0 0.0
    %2624 = vmatprep.subr.mxu0 0.0
    %2625 = vmatpush1.msra.mxu0 0.0
    %2626 = vmatprep.subr.mxu0 0.0
    %2627 = vmatpush1.msra.mxu0 0.0
    %2628 = vmatprep.subr.mxu0 0.0
    %2629 = vmatpush1.msra.mxu0 0.0
    %2630 = vmatprep.subr.mxu0 0.0
    %2631 = vmatpush1.msra.mxu0 0.0
    %2632 = vmatprep.subr.mxu0 0.0
    %2633 = vmatpush1.msra.mxu0 0.0
    %2634 = vmatprep.subr.mxu0 0.0
    %2635 = vmatpush1.msra.mxu0 0.0
    %2636 = vmatprep.subr.mxu0 0.0
    %2637 = vmatpush1.msra.mxu0 0.0
    %2638 = vmatprep.subr.mxu0 0.0
    %2639 = vmatpush1.msra.mxu0 0.0
    %2640 = vmatprep.subr.mxu0 0.0
    %2641 = vmatpush1.msra.mxu0 0.0
    %2642 = vmatprep.subr.mxu0 0.0
    %2643 = vmatpush1.msra.mxu0 0.0
    %2644 = vmatprep.subr.mxu0 0.0
    %2645 = vmatpush1.msra.mxu0 0.0
    %2646 = vmatprep.subr.mxu0 0.0
    %2647 = vmatpush1.msra.mxu0 0.0
    %2648 = vmatprep.subr.mxu0 0.0
    %2649 = vmatpush1.msra.mxu0 0.0
    %2650 = vmatprep.mubr.f32.mxu0 0.0
    %2651 = vmatmul.mubr.f32.gmra.mrb[0].mxu0 %v2581
    %v2652 = vpop.f32.mrb[0].mxu0
    %v2653 = vadd.f32 %v2578, %v2652
    %v2654 = vpop.f32.mrb[0].mxu0
    %2655 = vmatprep.mubr.f32.mxu0 0.0
    %2656 = vmatmul.mubr.f32.gmra.mrb[0].mxu0 %v2584
    %v2657 = vpop.f32.mrb[0].mxu0
    %v2658 = vadd.f32 %v2578, %v2657
    %v2659 = vpop.f32.mrb[0].mxu0
    %2660 = vdwg.mxu0
    %2663 = vset.pattern.permute.xlu0 0
    %2664 = vperm.xlu0 %2663, %v2653
    %v2665 = vpop.permute.xlu0 %2664
    %2666 = vset.pattern.permute.xlu0 0
    %2667 = vperm.xlu0 %2666, %v2658
    %v2668 = vpop.permute.xlu0 %2667
    %v2669 = vlaneseq
    %v2670 = vshrl.u32 %v2669, 7
    %v2671 = vsub.s32 %v253, %v2670
    %v2672 = vrot.slane %v2665, %v2671
    %v2673 = vlaneseq
    %v2674 = vshrl.u32 %v2673, 7
    %v2675 = vsub.s32 %v253, %v2674
    %v2676 = vrot.slane %v2668, %v2675
    %v2677 = vsel %vm354, %v2676, %v2672
    %vm2679 = vcmask 58368
    %2680 = vst.msk [vmem:[#allocation4] sm:$0x3] %vm2679, %v2677
    // Predicated region
    $region30: #{seq2seq_forward.1} parent=1 // pred_check
      _
    $region31: #{seq2seq_forward.1} parent=1 // pred_check_branch
      %2682 = sbr.rel (0) target = $region33
    $region32: #{seq2seq_forward.1} parent=1 // pred_region
      %s2684 = ssub.s32 32, 32
      %2685 = vsyncadd [#allocation5], %s2684
      %s2687 = sshll.u32 [#allocation4], 4
      %s2688 = int_to_ptr.vmem [resolvable:$true] %s2687
      %2690 = dma.vmem_to_hbm [thread:$0]  %s2688, 32, %s7, [#allocation5]
    $region33: #{seq2seq_forward.1} parent=1 // pred_fallthru
      _
    // Predicated region
    $region34: #{seq2seq_forward.1} parent=1 // pred_check
      _
    $region35: #{seq2seq_forward.1} parent=1 // pred_check_branch
      %2692 = sbr.rel (0) target = $region37
    $region36: #{seq2seq_forward.1} parent=1 // pred_region
      %2693 = dma.done [#allocation5], 32
    $region37: #{seq2seq_forward.1} parent=1 // pred_fallthru
      _
    %2694 = vsyncpa [#allocation5], 1

</llo_original>
